<compile_context>
chip_gen: v7x
topology: tpu7x:2x2x1
jax: 0.10.0
libtpu: 0.0.40
codegen_flags: <defaults>
</compile_context>

<pallas_src>
import functools

import jax
import jax.numpy as jnp
from jax.experimental import pallas as pl
from jax.experimental.pallas import tpu as pltpu


def _round_up(x: int, m: int) -> int:
    return ((x + m - 1) // m) * m


def _itemsize(a) -> int:
    return jnp.dtype(a.dtype).itemsize


def _layer_norm_f32(x_ref, gamma_ref, beta_ref, eps):
    x = x_ref[...].astype(jnp.float32)                      # (tm, D)
    mean = jnp.mean(x, axis=-1, keepdims=True)
    xc = x - mean
    var = jnp.mean(xc * xc, axis=-1, keepdims=True)
    inv = jax.lax.rsqrt(var + eps)
    return xc * inv * gamma_ref[...].astype(jnp.float32) + beta_ref[...].astype(jnp.float32)


def _gelu_exact(h):
    # Exact, erf-based GELU (PyTorch nn.GELU default).
    return 0.5 * h * (1.0 + jax.lax.erf(h * 0.7071067811865476))


def _mlp_resident_kernel(x_ref, gamma_ref, beta_ref, w1_ref, b1_ref, w2_ref, b2_ref,
                         o_ref, *, eps, op_dtype):
    """Whole hidden dim in one step; W1/W2 are VMEM-resident for the entire grid."""
    xn = _layer_norm_f32(x_ref, gamma_ref, beta_ref, eps).astype(op_dtype)
    h = jnp.dot(xn, w1_ref[...], preferred_element_type=jnp.float32)
    h = h + b1_ref[...].astype(jnp.float32)
    if op_dtype == jnp.bfloat16:
        h = h.astype(jnp.bfloat16)            # packed bf16 GELU on v6e/v7x VPU
    h = _gelu_exact(h)
    # (Dropout: identity in eval mode.)
    out = jnp.dot(h.astype(op_dtype), w2_ref[...], preferred_element_type=jnp.float32)
    o_ref[...] = (out + b2_ref[...].astype(jnp.float32)).astype(o_ref.dtype)


def _mlp_streamed_kernel(x_ref, gamma_ref, beta_ref, w1_ref, b1_ref, w2_ref, b2_ref,
                         o_ref, xn_ref, acc_ref, *, eps, op_dtype):
    """Hidden dim tiled (grid axis 1); weights streamed in (D, th)/(th, D) chunks."""
    k = pl.program_id(1)

    @pl.when(k == 0)
    def _():
        xn_ref[...] = _layer_norm_f32(x_ref, gamma_ref, beta_ref, eps).astype(xn_ref.dtype)
        acc_ref[...] = jnp.zeros_like(acc_ref)

    h = jnp.dot(xn_ref[...], w1_ref[...], preferred_element_type=jnp.float32)
    h = h + b1_ref[...].astype(jnp.float32)
    if op_dtype == jnp.bfloat16:
        h = h.astype(jnp.bfloat16)
    h = _gelu_exact(h)
    # (Dropout: identity in eval mode.)
    acc_ref[...] += jnp.dot(h.astype(op_dtype), w2_ref[...], preferred_element_type=jnp.float32)

    @pl.when(k == pl.num_programs(1) - 1)
    def _():
        o_ref[...] = (acc_ref[...] + b2_ref[...].astype(jnp.float32)).astype(o_ref.dtype)


def mlp_block(x, gamma, beta, w1, b1, w2, b2, *, eps=1e-5, row_tile=512, h_tile=512):
    """Eval-mode forward of MLPBlock.  x: (B, S, D) -> (B, S, D)."""
    B, S, D = x.shape
    Din, H = w1.shape
    assert Din == D and w2.shape == (H, D)
    assert gamma.shape == (D,) and beta.shape == (D,)
    assert b1.shape == (H,) and b2.shape == (D,)

    N = B * S
    # Matmul / activation compute dtype follows x (bf16 fast path on v6e/v7x, else f32).
    op_dtype = jnp.bfloat16 if x.dtype == jnp.bfloat16 else jnp.float32
    sub = 16 if op_dtype == jnp.bfloat16 else 8    # sublane packing granularity

    # --- Generation-aware VMEM budget: 64 MiB/TC on v7x, 128 MiB on v5e/v6e. ---
    try:
        vmem_cap = int(pltpu.get_tpu_info().vmem_capacity_bytes)
    except Exception:
        vmem_cap = 64 * 1024 * 1024                # conservative (v7x-sized) fallback
    vmem_budget = int(vmem_cap * 0.85)

    x2 = x.reshape(N, D)
    pad_rows = 0
    if N < sub:
        # Only inputs smaller than one sublane group are padded (<= 15 rows).  Larger ragged
        # N is handled by Pallas partial last blocks, so no full-array jnp.pad / HBM copy.
        pad_rows = sub - N
        x2 = jnp.pad(x2, ((0, pad_rows), (0, 0)))
    N_eff = N + pad_rows

    gamma2, beta2 = gamma.reshape(1, D), beta.reshape(1, D)
    b1_2, b2_2 = b1.reshape(1, H), b2.reshape(1, D)

    w_item = max(_itemsize(w1), _itemsize(w2))
    x_item = _itemsize(x)
    op_item = jnp.dtype(op_dtype).itemsize

    def est_vmem(tm_, th_, wbuf):
        v = 2 * tm_ * D * x_item                        # x tile (double-buffered)
        v += 2 * tm_ * D * x_item                       # out tile (double-buffered)
        v += wbuf * (D * th_ + th_ * D) * w_item        # w1 + w2 blocks
        v += wbuf * th_ * _itemsize(b1)                 # b1 block
        v += 2 * D * (_itemsize(gamma) + _itemsize(beta) + _itemsize(b2))
        if th_ < H:                                     # streamed-path scratch
            v += tm_ * D * op_item + tm_ * D * 4        # xn scratch + f32 accumulator
        return v

    tm_cap = max(sub, (N_eff // sub) * sub)             # keep block rows <= array rows

    def build_and_run(use_buffered):
        wbuf_res = 1 if use_buffered else 2
        tm = max(sub, min(_round_up(row_tile, sub), tm_cap))

        def mk_spec(shape, index_map, depth):
            if use_buffered:
                return pl.BlockSpec(shape, index_map, pipeline_mode=pl.Buffered(depth))
            return pl.BlockSpec(shape, index_map)

        resident = est_vmem(tm, H, wbuf_res) <= vmem_budget

        if resident:
            # Weights fully VMEM-resident: constant block indices -> fetched once per kernel.
            n_tiles = pl.cdiv(N_eff, tm)
            if n_tiles == 1 and N_eff >= 2 * sub:
                # Keep >= 2 row tiles so both v7x TensorCores get work ("parallel" axis).
                tm = min(tm_cap, _round_up((N_eff + 1) // 2, sub))
                n_tiles = pl.cdiv(N_eff, tm)
            grid = (n_tiles,)
            kernel = functools.partial(_mlp_resident_kernel, eps=eps, op_dtype=op_dtype)
            in_specs = [
                pl.BlockSpec((tm, D), lambda i: (i, 0)),         # x rows
                mk_spec((1, D), lambda i: (0, 0), 1),            # gamma
                mk_spec((1, D), lambda i: (0, 0), 1),            # beta
                mk_spec((D, H), lambda i: (0, 0), 1),            # w1 (resident)
                mk_spec((1, H), lambda i: (0, 0), 1),            # b1
                mk_spec((H, D), lambda i: (0, 0), 1),            # w2 (resident)
                mk_spec((1, D), lambda i: (0, 0), 1),            # b2
            ]
            out_specs = pl.BlockSpec((tm, D), lambda i: (i, 0))
            scratch_shapes = []
            dim_sem = ("parallel",)
        else:
            # Weights too large for VMEM: tile the hidden dim and stream weight chunks.
            th = None
            for cand in (h_tile, 1024, 512, 256, 128):
                if cand <= H and H % cand == 0 and est_vmem(tm, cand, 2) <= vmem_budget:
                    th = cand
                    break
            if th is None:
                # TODO(synk): H with no lane-aligned divisor that fits the VMEM budget.
                th = H
                for cand in (128, 256, 512):
                    if H % cand == 0:
                        th = cand
                        break
            # Deeper buffering on the streamed chunks hides their DMA when VMEM allows.
            w_depth = 3 if (use_buffered and est_vmem(tm, th, 3) <= vmem_budget) else 2
            grid = (pl.cdiv(N_eff, tm), H // th)
            kernel = functools.partial(_mlp_streamed_kernel, eps=eps, op_dtype=op_dtype)
            in_specs = [
                pl.BlockSpec((tm, D), lambda i, k: (i, 0)),          # x rows
                mk_spec((1, D), lambda i, k: (0, 0), 1),             # gamma
                mk_spec((1, D), lambda i, k: (0, 0), 1),             # beta
                mk_spec((D, th), lambda i, k: (0, k), w_depth),      # w1 hidden chunk
                mk_spec((1, th), lambda i, k: (0, k), w_depth),      # b1 hidden chunk
                mk_spec((th, D), lambda i, k: (k, 0), w_depth),      # w2 hidden chunk
                mk_spec((1, D), lambda i, k: (0, 0), 1),             # b2
            ]
            out_specs = pl.BlockSpec((tm, D), lambda i, k: (i, 0))
            scratch_shapes = [
                pltpu.VMEM((tm, D), op_dtype),       # LayerNorm'd activations, reused over k
                pltpu.VMEM((tm, D), jnp.float32),    # output accumulator
            ]
            dim_sem = ("parallel", "arbitrary")

        return pl.pallas_call(
            kernel,
            out_shape=jax.ShapeDtypeStruct((N_eff, D), x.dtype),
            grid_spec=pltpu.PrefetchScalarGridSpec(
                num_scalar_prefetch=0,
                grid=grid,
                in_specs=in_specs,
                out_specs=out_specs,
                scratch_shapes=scratch_shapes,
            ),
            compiler_params=pltpu.CompilerParams(
                dimension_semantics=dim_sem,
                vmem_limit_bytes=vmem_budget,
            ),
        )(x2, gamma2, beta2, w1, b1_2, w2, b2_2)

    try:
        out = build_and_run(True)
    except Exception:
        # Portability fallback: retry without pipeline_mode=pl.Buffered(...).
        out = build_and_run(False)

    if pad_rows:
        out = out[:N]
    return out.reshape(B, S, D)


def mlp_block_ref(x, gamma, beta, w1, b1, w2, b2, eps=1e-5):
    xf = x.astype(jnp.float32)
    mean = jnp.mean(xf, axis=-1, keepdims=True)
    var = jnp.mean((xf - mean) ** 2, axis=-1, keepdims=True)
    xn = (xf - mean) * jax.lax.rsqrt(var + eps) * gamma.astype(jnp.float32) \
        + beta.astype(jnp.float32)
    h = xn @ w1.astype(jnp.float32) + b1.astype(jnp.float32)
    h = 0.5 * h * (1.0 + jax.lax.erf(h / jnp.sqrt(2.0)))
    return (h @ w2.astype(jnp.float32) + b2.astype(jnp.float32)).astype(jnp.float32)


if __name__ == "__main__":
    # Small shapes consistent with the module's forward: (batch, seq, embedding_dim).
    # D=128 keeps the lane axis dense (multiple of 128), H=256 is the MLP hidden size.
    B, S, D, H = 2, 8, 128, 256
    key = jax.random.PRNGKey(0)
    kx, kw1, kb1, kw2, kb2 = jax.random.split(key, 5)

    x = jax.random.normal(kx, (B, S, D), dtype=jnp.float32)
    gamma = jnp.ones((D,), jnp.float32)          # LayerNorm init
    beta = jnp.zeros((D,), jnp.float32)
    w1 = jax.random.normal(kw1, (D, H), dtype=jnp.float32) * 0.02
    b1 = jax.random.normal(kb1, (H,), dtype=jnp.float32) * 0.01
    w2 = jax.random.normal(kw2, (H, D), dtype=jnp.float32) * 0.02
    b2 = jax.random.normal(kb2, (D,), dtype=jnp.float32) * 0.01

    # f32 path (weights VMEM-resident).
    y = jax.block_until_ready(mlp_block(x, gamma, beta, w1, b1, w2, b2))
    y_ref = mlp_block_ref(x, gamma, beta, w1, b1, w2, b2)
    assert y.shape == (B, S, D)
    assert jnp.allclose(y, y_ref, atol=1e-4, rtol=1e-4), "f32 mismatch vs reference"

    # Ragged row count (N not a multiple of the row tile) exercises the partial-block path.
    x_odd = x[:, :7, :]
    y_odd = jax.block_until_ready(mlp_block(x_odd, gamma, beta, w1, b1, w2, b2))
    y_odd_ref = mlp_block_ref(x_odd, gamma, beta, w1, b1, w2, b2)
    assert y_odd.shape == (B, 7, D)
    assert jnp.allclose(y_odd, y_odd_ref, atol=1e-4, rtol=1e-4), "ragged-N mismatch"

    # bf16 operand path (v6e/v7x MXU fast path); f32 accumulation + f32 LN stats bound the error.
    to_bf16 = lambda a: a.astype(jnp.bfloat16)
    y_bf16 = jax.block_until_ready(
        mlp_block(to_bf16(x), to_bf16(gamma), to_bf16(beta),
                  to_bf16(w1), to_bf16(b1), to_bf16(w2), to_bf16(b2)))
    assert jnp.allclose(y_bf16.astype(jnp.float32), y_ref, atol=5e-2, rtol=5e-2), \
        "bf16 mismatch vs reference"

    print("KERNEL_OK")
</pallas_src>

<mosaic_0001>
module attributes {stable_mosaic.version = 11 : i64} {
  func.func @_mlp_resident_kernel(%arg0: i32, %arg1: memref<8x128xf32, #tpu.memory_space<vmem>>, %arg2: memref<1x128xf32, #tpu.memory_space<vmem>>, %arg3: memref<1x128xf32, #tpu.memory_space<vmem>>, %arg4: memref<128x256xf32, #tpu.memory_space<vmem>>, %arg5: memref<1x256xf32, #tpu.memory_space<vmem>>, %arg6: memref<256x128xf32, #tpu.memory_space<vmem>>, %arg7: memref<1x128xf32, #tpu.memory_space<vmem>>, %arg8: memref<8x128xf32, #tpu.memory_space<vmem>>) attributes {dimension_semantics = [#tpu.dimension_semantics<parallel>], iteration_bounds = array<i64: 2>, scalar_prefetch = 0 : i64, scratch_operands = 0 : i64, tpu.core_type = #tpu.core_type<tc>, window_params = [{transform_indices = @transform_0, window_bounds = array<i64: 8, 128>}, {pipeline_mode = #tpu.pipeline_mode<synchronous>, transform_indices = @transform_1, window_bounds = array<i64: 1, 128>}, {pipeline_mode = #tpu.pipeline_mode<synchronous>, transform_indices = @transform_2, window_bounds = array<i64: 1, 128>}, {pipeline_mode = #tpu.pipeline_mode<synchronous>, transform_indices = @transform_3, window_bounds = array<i64: 128, 256>}, {pipeline_mode = #tpu.pipeline_mode<synchronous>, transform_indices = @transform_4, window_bounds = array<i64: 1, 256>}, {pipeline_mode = #tpu.pipeline_mode<synchronous>, transform_indices = @transform_5, window_bounds = array<i64: 256, 128>}, {pipeline_mode = #tpu.pipeline_mode<synchronous>, transform_indices = @transform_6, window_bounds = array<i64: 1, 128>}, {transform_indices = @transform_7, window_bounds = array<i64: 8, 128>}]} {
    %c0 = arith.constant 0 : index
    %c0_0 = arith.constant 0 : index
    %0 = vector.load %arg1[%c0, %c0_0] : memref<8x128xf32, #tpu.memory_space<vmem>>, vector<8x128xf32>
    %cst = arith.constant dense<0.000000e+00> : vector<8xf32>
    %1 = vector.multi_reduction <add>, %0, %cst [1] : vector<8x128xf32> to vector<8xf32>
    %2 = vector.shape_cast %1 : vector<8xf32> to vector<8x1xf32>
    %cst_1 = arith.constant 1.280000e+02 : f32
    %3 = vector.broadcast %cst_1 : f32 to vector<8x1xf32>
    %4 = arith.divf %2, %3 : vector<8x1xf32>
    %5 = vector.broadcast %4 : vector<8x1xf32> to vector<8x128xf32>
    %6 = arith.subf %0, %5 : vector<8x128xf32>
    %7 = arith.mulf %6, %6 : vector<8x128xf32>
    %cst_2 = arith.constant dense<0.000000e+00> : vector<8xf32>
    %8 = vector.multi_reduction <add>, %7, %cst_2 [1] : vector<8x128xf32> to vector<8xf32>
    %9 = vector.shape_cast %8 : vector<8xf32> to vector<8x1xf32>
    %cst_3 = arith.constant 1.280000e+02 : f32
    %10 = vector.broadcast %cst_3 : f32 to vector<8x1xf32>
    %11 = arith.divf %9, %10 : vector<8x1xf32>
    %cst_4 = arith.constant 9.99999974E-6 : f32
    %12 = vector.broadcast %cst_4 : f32 to vector<8x1xf32>
    %13 = arith.addf %11, %12 : vector<8x1xf32>
    %14 = math.rsqrt %13 : vector<8x1xf32>
    %15 = vector.broadcast %14 : vector<8x1xf32> to vector<8x128xf32>
    %16 = arith.mulf %6, %15 : vector<8x128xf32>
    %c0_5 = arith.constant 0 : index
    %c0_6 = arith.constant 0 : index
    %17 = vector.load %arg2[%c0_5, %c0_6] : memref<1x128xf32, #tpu.memory_space<vmem>>, vector<1x128xf32>
    %18 = vector.broadcast %17 : vector<1x128xf32> to vector<8x128xf32>
    %19 = arith.mulf %16, %18 : vector<8x128xf32>
    %c0_7 = arith.constant 0 : index
    %c0_8 = arith.constant 0 : index
    %20 = vector.load %arg3[%c0_7, %c0_8] : memref<1x128xf32, #tpu.memory_space<vmem>>, vector<1x128xf32>
    %21 = vector.broadcast %20 : vector<1x128xf32> to vector<8x128xf32>
    %22 = arith.addf %19, %21 : vector<8x128xf32>
    %c0_9 = arith.constant 0 : index
    %c0_10 = arith.constant 0 : index
    %23 = vector.load %arg4[%c0_9, %c0_10] : memref<128x256xf32, #tpu.memory_space<vmem>>, vector<128x256xf32>
    %cst_11 = arith.constant dense<0.000000e+00> : vector<8x256xf32>
    %24 = tpu.matmul %22, %23, %cst_11 {dimension_numbers = #tpu.dot_dimension_numbers<[1], [0], [0], [1], [0, 0, 1, 1], [], []>} : vector<8x128xf32>, vector<128x256xf32>, vector<8x256xf32> -> vector<8x256xf32>
    %c0_12 = arith.constant 0 : index
    %c0_13 = arith.constant 0 : index
    %25 = vector.load %arg5[%c0_12, %c0_13] : memref<1x256xf32, #tpu.memory_space<vmem>>, vector<1x256xf32>
    %26 = vector.broadcast %25 : vector<1x256xf32> to vector<8x256xf32>
    %27 = arith.addf %24, %26 : vector<8x256xf32>
    %cst_14 = arith.constant 5.000000e-01 : f32
    %28 = vector.broadcast %cst_14 : f32 to vector<8x256xf32>
    %29 = arith.mulf %28, %27 : vector<8x256xf32>
    %cst_15 = arith.constant 0.707106769 : f32
    %30 = vector.broadcast %cst_15 : f32 to vector<8x256xf32>
    %31 = arith.mulf %27, %30 : vector<8x256xf32>
    %32 = math.erf %31 : vector<8x256xf32>
    %cst_16 = arith.constant 1.000000e+00 : f32
    %33 = vector.broadcast %cst_16 : f32 to vector<8x256xf32>
    %34 = arith.addf %33, %32 : vector<8x256xf32>
    %35 = arith.mulf %29, %34 : vector<8x256xf32>
    %c0_17 = arith.constant 0 : index
    %c0_18 = arith.constant 0 : index
    %36 = vector.load %arg6[%c0_17, %c0_18] : memref<256x128xf32, #tpu.memory_space<vmem>>, vector<256x128xf32>
    %cst_19 = arith.constant dense<0.000000e+00> : vector<8x128xf32>
    %37 = tpu.matmul %35, %36, %cst_19 {dimension_numbers = #tpu.dot_dimension_numbers<[1], [0], [0], [1], [0, 0, 1, 1], [], []>} : vector<8x256xf32>, vector<256x128xf32>, vector<8x128xf32> -> vector<8x128xf32>
    %c0_20 = arith.constant 0 : index
    %c0_21 = arith.constant 0 : index
    %38 = vector.load %arg7[%c0_20, %c0_21] : memref<1x128xf32, #tpu.memory_space<vmem>>, vector<1x128xf32>
    %39 = vector.broadcast %38 : vector<1x128xf32> to vector<8x128xf32>
    %40 = arith.addf %37, %39 : vector<8x128xf32>
    %c0_22 = arith.constant 0 : index
    %c0_23 = arith.constant 0 : index
    %41 = vector.load %arg8[%c0_22, %c0_23] : memref<8x128xf32, #tpu.memory_space<vmem>>, vector<8x128xf32>
    tpu.vector_store %arg8[%c0_22, %c0_23], %40 {strides = array<i32>} : memref<8x128xf32, #tpu.memory_space<vmem>>, vector<8x128xf32>,
    return
  }
  func.func @transform_0(%arg0: i32) -> (i32, i32) {
    %c0_i32 = arith.constant 0 : i32
    %c0_i32_0 = arith.constant 0 : i32
    return %arg0, %c0_i32 : i32, i32
  }
  func.func @transform_1(%arg0: i32) -> (i32, i32) {
    %c0_i32 = arith.constant 0 : i32
    %c0_i32_0 = arith.constant 0 : i32
    %c0_i32_1 = arith.constant 0 : i32
    return %c0_i32, %c0_i32_0 : i32, i32
  }
  func.func @transform_2(%arg0: i32) -> (i32, i32) {
    %c0_i32 = arith.constant 0 : i32
    %c0_i32_0 = arith.constant 0 : i32
    %c0_i32_1 = arith.constant 0 : i32
    return %c0_i32, %c0_i32_0 : i32, i32
  }
  func.func @transform_3(%arg0: i32) -> (i32, i32) {
    %c0_i32 = arith.constant 0 : i32
    %c0_i32_0 = arith.constant 0 : i32
    %c0_i32_1 = arith.constant 0 : i32
    return %c0_i32, %c0_i32_0 : i32, i32
  }
  func.func @transform_4(%arg0: i32) -> (i32, i32) {
    %c0_i32 = arith.constant 0 : i32
    %c0_i32_0 = arith.constant 0 : i32
    %c0_i32_1 = arith.constant 0 : i32
    return %c0_i32, %c0_i32_0 : i32, i32
  }
  func.func @transform_5(%arg0: i32) -> (i32, i32) {
    %c0_i32 = arith.constant 0 : i32
    %c0_i32_0 = arith.constant 0 : i32
    %c0_i32_1 = arith.constant 0 : i32
    return %c0_i32, %c0_i32_0 : i32, i32
  }
  func.func @transform_6(%arg0: i32) -> (i32, i32) {
    %c0_i32 = arith.constant 0 : i32
    %c0_i32_0 = arith.constant 0 : i32
    %c0_i32_1 = arith.constant 0 : i32
    return %c0_i32, %c0_i32_0 : i32, i32
  }
  func.func @transform_7(%arg0: i32) -> (i32, i32) {
    %c0_i32 = arith.constant 0 : i32
    %c0_i32_0 = arith.constant 0 : i32
    return %arg0, %c0_i32 : i32, i32
  }
}

module attributes {stable_mosaic.version = 11 : i64} {
  func.func @_mlp_resident_kernel(%arg0: i32, %arg1: memref<8x128xf32, #tpu.memory_space<vmem>>, %arg2: memref<1x128xf32, #tpu.memory_space<vmem>>, %arg3: memref<1x128xf32, #tpu.memory_space<vmem>>, %arg4: memref<128x256xf32, #tpu.memory_space<vmem>>, %arg5: memref<1x256xf32, #tpu.memory_space<vmem>>, %arg6: memref<256x128xf32, #tpu.memory_space<vmem>>, %arg7: memref<1x128xf32, #tpu.memory_space<vmem>>, %arg8: memref<8x128xf32, #tpu.memory_space<vmem>>) attributes {dimension_semantics = [#tpu.dimension_semantics<parallel>], iteration_bounds = array<i64: 2>, scalar_prefetch = 0 : i64, scratch_operands = 0 : i64, tpu.core_type = #tpu.core_type<tc>, window_params = [{transform_indices = @transform_0, window_bounds = array<i64: 8, 128>}, {pipeline_mode = #tpu.pipeline_mode<synchronous>, transform_indices = @transform_1, window_bounds = array<i64: 1, 128>}, {pipeline_mode = #tpu.pipeline_mode<synchronous>, transform_indices = @transform_2, window_bounds = array<i64: 1, 128>}, {pipeline_mode = #tpu.pipeline_mode<synchronous>, transform_indices = @transform_3, window_bounds = array<i64: 128, 256>}, {pipeline_mode = #tpu.pipeline_mode<synchronous>, transform_indices = @transform_4, window_bounds = array<i64: 1, 256>}, {pipeline_mode = #tpu.pipeline_mode<synchronous>, transform_indices = @transform_5, window_bounds = array<i64: 256, 128>}, {pipeline_mode = #tpu.pipeline_mode<synchronous>, transform_indices = @transform_6, window_bounds = array<i64: 1, 128>}, {transform_indices = @transform_7, window_bounds = array<i64: 8, 128>}]} {
    %c0 = arith.constant 0 : index
    %c0_0 = arith.constant 0 : index
    %0 = vector.load %arg1[%c0, %c0_0] : memref<8x128xf32, #tpu.memory_space<vmem>>, vector<8x128xf32>
    %cst = arith.constant dense<0.000000e+00> : vector<8xf32>
    %1 = vector.multi_reduction <add>, %0, %cst [1] : vector<8x128xf32> to vector<8xf32>
    %2 = vector.shape_cast %1 : vector<8xf32> to vector<8x1xf32>
    %cst_1 = arith.constant 1.280000e+02 : f32
    %3 = vector.broadcast %cst_1 : f32 to vector<8x1xf32>
    %4 = arith.divf %2, %3 : vector<8x1xf32>
    %5 = vector.broadcast %4 : vector<8x1xf32> to vector<8x128xf32>
    %6 = arith.subf %0, %5 : vector<8x128xf32>
    %7 = arith.mulf %6, %6 : vector<8x128xf32>
    %cst_2 = arith.constant dense<0.000000e+00> : vector<8xf32>
    %8 = vector.multi_reduction <add>, %7, %cst_2 [1] : vector<8x128xf32> to vector<8xf32>
    %9 = vector.shape_cast %8 : vector<8xf32> to vector<8x1xf32>
    %cst_3 = arith.constant 1.280000e+02 : f32
    %10 = vector.broadcast %cst_3 : f32 to vector<8x1xf32>
    %11 = arith.divf %9, %10 : vector<8x1xf32>
    %cst_4 = arith.constant 9.99999974E-6 : f32
    %12 = vector.broadcast %cst_4 : f32 to vector<8x1xf32>
    %13 = arith.addf %11, %12 : vector<8x1xf32>
    %14 = math.rsqrt %13 : vector<8x1xf32>
    %15 = vector.broadcast %14 : vector<8x1xf32> to vector<8x128xf32>
    %16 = arith.mulf %6, %15 : vector<8x128xf32>
    %c0_5 = arith.constant 0 : index
    %c0_6 = arith.constant 0 : index
    %17 = vector.load %arg2[%c0_5, %c0_6] : memref<1x128xf32, #tpu.memory_space<vmem>>, vector<1x128xf32>
    %18 = vector.broadcast %17 : vector<1x128xf32> to vector<8x128xf32>
    %19 = arith.mulf %16, %18 : vector<8x128xf32>
    %c0_7 = arith.constant 0 : index
    %c0_8 = arith.constant 0 : index
    %20 = vector.load %arg3[%c0_7, %c0_8] : memref<1x128xf32, #tpu.memory_space<vmem>>, vector<1x128xf32>
    %21 = vector.broadcast %20 : vector<1x128xf32> to vector<8x128xf32>
    %22 = arith.addf %19, %21 : vector<8x128xf32>
    %c0_9 = arith.constant 0 : index
    %c0_10 = arith.constant 0 : index
    %23 = vector.load %arg4[%c0_9, %c0_10] : memref<128x256xf32, #tpu.memory_space<vmem>>, vector<128x256xf32>
    %cst_11 = arith.constant dense<0.000000e+00> : vector<8x256xf32>
    %24 = tpu.matmul %22, %23, %cst_11 {dimension_numbers = #tpu.dot_dimension_numbers<[1], [0], [0], [1], [0, 0, 1, 1], [], []>} : vector<8x128xf32>, vector<128x256xf32>, vector<8x256xf32> -> vector<8x256xf32>
    %c0_12 = arith.constant 0 : index
    %c0_13 = arith.constant 0 : index
    %25 = vector.load %arg5[%c0_12, %c0_13] : memref<1x256xf32, #tpu.memory_space<vmem>>, vector<1x256xf32>
    %26 = vector.broadcast %25 : vector<1x256xf32> to vector<8x256xf32>
    %27 = arith.addf %24, %26 : vector<8x256xf32>
    %cst_14 = arith.constant 5.000000e-01 : f32
    %28 = vector.broadcast %cst_14 : f32 to vector<8x256xf32>
    %29 = arith.mulf %28, %27 : vector<8x256xf32>
    %cst_15 = arith.constant 0.707106769 : f32
    %30 = vector.broadcast %cst_15 : f32 to vector<8x256xf32>
    %31 = arith.mulf %27, %30 : vector<8x256xf32>
    %32 = math.erf %31 : vector<8x256xf32>
    %cst_16 = arith.constant 1.000000e+00 : f32
    %33 = vector.broadcast %cst_16 : f32 to vector<8x256xf32>
    %34 = arith.addf %33, %32 : vector<8x256xf32>
    %35 = arith.mulf %29, %34 : vector<8x256xf32>
    %c0_17 = arith.constant 0 : index
    %c0_18 = arith.constant 0 : index
    %36 = vector.load %arg6[%c0_17, %c0_18] : memref<256x128xf32, #tpu.memory_space<vmem>>, vector<256x128xf32>
    %cst_19 = arith.constant dense<0.000000e+00> : vector<8x128xf32>
    %37 = tpu.matmul %35, %36, %cst_19 {dimension_numbers = #tpu.dot_dimension_numbers<[1], [0], [0], [1], [0, 0, 1, 1], [], []>} : vector<8x256xf32>, vector<256x128xf32>, vector<8x128xf32> -> vector<8x128xf32>
    %c0_20 = arith.constant 0 : index
    %c0_21 = arith.constant 0 : index
    %38 = vector.load %arg7[%c0_20, %c0_21] : memref<1x128xf32, #tpu.memory_space<vmem>>, vector<1x128xf32>
    %39 = vector.broadcast %38 : vector<1x128xf32> to vector<8x128xf32>
    %40 = arith.addf %37, %39 : vector<8x128xf32>
    %c0_22 = arith.constant 0 : index
    %c0_23 = arith.constant 0 : index
    %41 = vector.load %arg8[%c0_22, %c0_23] : memref<8x128xf32, #tpu.memory_space<vmem>>, vector<8x128xf32>
    tpu.vector_store %arg8[%c0_22, %c0_23], %40 {strides = array<i32>} : memref<8x128xf32, #tpu.memory_space<vmem>>, vector<8x128xf32>,
    return
  }
  func.func @transform_0(%arg0: i32) -> (i32, i32) {
    %c0_i32 = arith.constant 0 : i32
    %c0_i32_0 = arith.constant 0 : i32
    return %arg0, %c0_i32 : i32, i32
  }
  func.func @transform_1(%arg0: i32) -> (i32, i32) {
    %c0_i32 = arith.constant 0 : i32
    %c0_i32_0 = arith.constant 0 : i32
    %c0_i32_1 = arith.constant 0 : i32
    return %c0_i32, %c0_i32_0 : i32, i32
  }
  func.func @transform_2(%arg0: i32) -> (i32, i32) {
    %c0_i32 = arith.constant 0 : i32
    %c0_i32_0 = arith.constant 0 : i32
    %c0_i32_1 = arith.constant 0 : i32
    return %c0_i32, %c0_i32_0 : i32, i32
  }
  func.func @transform_3(%arg0: i32) -> (i32, i32) {
    %c0_i32 = arith.constant 0 : i32
    %c0_i32_0 = arith.constant 0 : i32
    %c0_i32_1 = arith.constant 0 : i32
    return %c0_i32, %c0_i32_0 : i32, i32
  }
  func.func @transform_4(%arg0: i32) -> (i32, i32) {
    %c0_i32 = arith.constant 0 : i32
    %c0_i32_0 = arith.constant 0 : i32
    %c0_i32_1 = arith.constant 0 : i32
    return %c0_i32, %c0_i32_0 : i32, i32
  }
  func.func @transform_5(%arg0: i32) -> (i32, i32) {
    %c0_i32 = arith.constant 0 : i32
    %c0_i32_0 = arith.constant 0 : i32
    %c0_i32_1 = arith.constant 0 : i32
    return %c0_i32, %c0_i32_0 : i32, i32
  }
  func.func @transform_6(%arg0: i32) -> (i32, i32) {
    %c0_i32 = arith.constant 0 : i32
    %c0_i32_0 = arith.constant 0 : i32
    %c0_i32_1 = arith.constant 0 : i32
    return %c0_i32, %c0_i32_0 : i32, i32
  }
  func.func @transform_7(%arg0: i32) -> (i32, i32) {
    %c0_i32 = arith.constant 0 : i32
    %c0_i32_0 = arith.constant 0 : i32
    return %arg0, %c0_i32 : i32, i32
  }
}

</mosaic_0001>

<llo_original>
// kernel: tpu_custom_call.1
$region0: #{tpu_custom_call.1}
  #allocation0 [shape = 'u32[]', space=smem, size = 0x4, offset = 0x4, fixed_abs, tag = 'smem constant byte address 0x4 - core index']
  #allocation1 [shape = 'u32[144,128]{1,0:T(1,128)}', space=vmem, size = 0x12000, scoped, tag = 'internal scratch']
  %s0 = inlined_call_operand.hbm [shape: f32[16,128], index: 0, kind: input, shape index: {}]
  %s1 = inlined_call_operand.vmem [shape: f32[1,128], index: 1, kind: input, shape index: {}]
  %s2 = inlined_call_operand.vmem [shape: f32[1,128], index: 2, kind: input, shape index: {}]
  %s3 = inlined_call_operand.hbm [shape: f32[128,256], index: 3, kind: input, shape index: {}]
  %s4 = inlined_call_operand.vmem [shape: f32[1,256], index: 4, kind: input, shape index: {}]
  %s5 = inlined_call_operand.hbm [shape: f32[256,128], index: 5, kind: input, shape index: {}]
  %s6 = inlined_call_operand.vmem [shape: f32[1,128], index: 6, kind: input, shape index: {}]
  %s7 = inlined_call_operand.hbm [shape: f32[16,128], index: 7, kind: output, shape index: {}]
  %s8 = sld [smem:[#allocation0]]
  $region73: #{tpu_custom_call.1} parent=0
    _
  %s10 = ssub.s32 1, %s8
  %s11 = scalar_select 0, %s10, %s8
  $region1: #{tpu_custom_call.1} parent=0
    #allocation2 [shape = 'u8[8192]{0}', space=vmem, size = 0x2000, scoped, tag = 'input window, operand 0']
    #allocation3 [shape = 's32[2]{0}', space=sflag, size = 0x8, scoped, tag = 'scoped memory for tpu_custom_call.1']
    #allocation4 [shape = 's32[2]{0}', space=sflag, size = 0x8, scoped, tag = 'scoped memory for tpu_custom_call.1']
    #allocation5 [shape = 'u8[131072]{0}', space=vmem, size = 0x20000, scoped, tag = 'input window, operand 3, single buffered']
    #allocation6 [shape = 's32[1]{0}', space=sflag, size = 0x4, scoped, tag = 'scoped memory for tpu_custom_call.1']
    #allocation7 [shape = 'u8[131072]{0}', space=vmem, size = 0x20000, scoped, tag = 'input window, operand 5, single buffered']
    #allocation8 [shape = 'u8[8192]{0}', space=vmem, size = 0x2000, scoped, tag = 'output window, operand 0']
    %12 = vsyncpa [#allocation3], 0
    %s13 = scalar_lea.sflag [#allocation3], 1
    %14 = vsyncpa %s13, 0
    %15 = vsyncpa [#allocation6], 0
    %16 = vsyncpa [#allocation4], 0
    %s17 = scalar_lea.sflag [#allocation4], 1
    %18 = vsyncpa %s17, 0
    loop: start=0, step=1, limit=4
    $region2: #{tpu_custom_call.1} parent=1 // loop_pre_header
      _
    $region3: #{tpu_custom_call.1} parent=1 // loop_header
      %s20 = sphi 0, %s24
      %p21 = scmp.ge.s32.totalorder %s20, 4
      %s30 = sphi 0, %s32
      %s33 = sphi 0, %s30
      %s34 = sphi 0, %s33
      %s50 = sphi 0, %s34
      %s54 = sphi 0, %s54
      %s56 = sphi 0, %s54
      %s57 = sphi 0, %s56
      %s71 = sphi 0, %s57
      %s75 = sphi 0, %s75
      %s77 = sphi 0, %s75
      %s78 = sphi 0, %s77
      %s92 = sphi 0, %s78
      %s96 = sphi 0, %s96
      %s98 = sphi 0, %s96
      %s99 = sphi 0, %s98
      %s113 = sphi 0, %s99
      %s117 = sphi 0, %s117
      %s119 = sphi 0, %s117
      %s120 = sphi 0, %s119
      %s134 = sphi 0, %s120
      %s138 = sphi 0, %s138
      %s140 = sphi 0, %s138
      %s141 = sphi 0, %s140
      %s155 = sphi 0, %s141
      %s159 = sphi 0, %s159
      %s161 = sphi 0, %s159
      %s162 = sphi 0, %s161
      %s176 = sphi 0, %s162
      %s182 = sphi 0, %s184
      %s185 = sphi 0, %s182
      %s186 = sphi 0, %s185
      %s202 = sphi 0, %s186
    $region4: #{tpu_custom_call.1} parent=1 // loop_header_branch
      %23 = sbr.rel (%p21) target = $region8
    $region5: #{tpu_custom_call.1} parent=1 // loop_body
      %s25 = ssub.s32 %s20, 1
      %s26 = ssub.s32 %s20, 2
      %s27 = sadd.s32 %s20, 1
      %s28 = ssub.s32 %s20, %s27
      %p29 = scmp.eq.s32.totalorder %s28, 0
      %s31 = sadd.s32 %s30, 1
      %s32 = scalar_select %p29, %s30, %s31
      %p35 = pneg %p29
      %p36 = scmp.eq.s32.totalorder %s20, 1
      %p37 = por %p35, %p36
      %p38 = scmp.ne.s32.totalorder %s30, %s33
      %p39 = scmp.eq.s32.totalorder %s20, 0
      %p40 = por %p38, %p39
      %p41 = scmp.ne.s32.totalorder %s30, %s33
      %p42 = scmp.eq.s32.totalorder %s25, 1
      %p43 = por %p41, %p42
      %p44 = scmp.ne.s32.totalorder %s33, %s34
      %p45 = scmp.eq.s32.totalorder %s25, 0
      %p46 = por %p44, %p45
      %p47 = scmp.ne.s32.totalorder %s33, %s34
      %p48 = scmp.eq.s32.totalorder %s26, 1
      %p49 = por %p47, %p48
      %p51 = scmp.ne.s32.totalorder %s34, %s50
      %p52 = scmp.eq.s32.totalorder %s26, 0
      %p53 = por %p51, %p52
      %s55 = sadd.s32 %s54, 1
      %p58 = scmp.eq.s32.totalorder %s20, 1
      %p59 = scmp.ne.s32.totalorder %s54, %s56
      %p60 = scmp.eq.s32.totalorder %s20, 0
      %p61 = por %p59, %p60
      %p62 = scmp.ne.s32.totalorder %s54, %s56
      %p63 = scmp.eq.s32.totalorder %s25, 1
      %p64 = por %p62, %p63
      %p65 = scmp.ne.s32.totalorder %s56, %s57
      %p66 = scmp.eq.s32.totalorder %s25, 0
      %p67 = por %p65, %p66
      %p68 = scmp.ne.s32.totalorder %s56, %s57
      %p69 = scmp.eq.s32.totalorder %s26, 1
      %p70 = por %p68, %p69
      %p72 = scmp.ne.s32.totalorder %s57, %s71
      %p73 = scmp.eq.s32.totalorder %s26, 0
      %p74 = por %p72, %p73
      %s76 = sadd.s32 %s75, 1
      %p79 = scmp.eq.s32.totalorder %s20, 1
      %p80 = scmp.ne.s32.totalorder %s75, %s77
      %p81 = scmp.eq.s32.totalorder %s20, 0
      %p82 = por %p80, %p81
      %p83 = scmp.ne.s32.totalorder %s75, %s77
      %p84 = scmp.eq.s32.totalorder %s25, 1
      %p85 = por %p83, %p84
      %p86 = scmp.ne.s32.totalorder %s77, %s78
      %p87 = scmp.eq.s32.totalorder %s25, 0
      %p88 = por %p86, %p87
      %p89 = scmp.ne.s32.totalorder %s77, %s78
      %p90 = scmp.eq.s32.totalorder %s26, 1
      %p91 = por %p89, %p90
      %p93 = scmp.ne.s32.totalorder %s78, %s92
      %p94 = scmp.eq.s32.totalorder %s26, 0
      %p95 = por %p93, %p94
      %s97 = sadd.s32 %s96, 1
      %p100 = scmp.eq.s32.totalorder %s20, 1
      %p101 = scmp.ne.s32.totalorder %s96, %s98
      %p102 = scmp.eq.s32.totalorder %s20, 0
      %p103 = por %p101, %p102
      %p104 = scmp.ne.s32.totalorder %s96, %s98
      %p105 = scmp.eq.s32.totalorder %s25, 1
      %p106 = por %p104, %p105
      %p107 = scmp.ne.s32.totalorder %s98, %s99
      %p108 = scmp.eq.s32.totalorder %s25, 0
      %p109 = por %p107, %p108
      %p110 = scmp.ne.s32.totalorder %s98, %s99
      %p111 = scmp.eq.s32.totalorder %s26, 1
      %p112 = por %p110, %p111
      %p114 = scmp.ne.s32.totalorder %s99, %s113
      %p115 = scmp.eq.s32.totalorder %s26, 0
      %p116 = por %p114, %p115
      %s118 = sadd.s32 %s117, 1
      %p121 = scmp.eq.s32.totalorder %s20, 1
      %p122 = scmp.ne.s32.totalorder %s117, %s119
      %p123 = scmp.eq.s32.totalorder %s20, 0
      %p124 = por %p122, %p123
      %p125 = scmp.ne.s32.totalorder %s117, %s119
      %p126 = scmp.eq.s32.totalorder %s25, 1
      %p127 = por %p125, %p126
      %p128 = scmp.ne.s32.totalorder %s119, %s120
      %p129 = scmp.eq.s32.totalorder %s25, 0
      %p130 = por %p128, %p129
      %p131 = scmp.ne.s32.totalorder %s119, %s120
      %p132 = scmp.eq.s32.totalorder %s26, 1
      %p133 = por %p131, %p132
      %p135 = scmp.ne.s32.totalorder %s120, %s134
      %p136 = scmp.eq.s32.totalorder %s26, 0
      %p137 = por %p135, %p136
      %s139 = sadd.s32 %s138, 1
      %p142 = scmp.eq.s32.totalorder %s20, 1
      %p143 = scmp.ne.s32.totalorder %s138, %s140
      %p144 = scmp.eq.s32.totalorder %s20, 0
      %p145 = por %p143, %p144
      %p146 = scmp.ne.s32.totalorder %s138, %s140
      %p147 = scmp.eq.s32.totalorder %s25, 1
      %p148 = por %p146, %p147
      %p149 = scmp.ne.s32.totalorder %s140, %s141
      %p150 = scmp.eq.s32.totalorder %s25, 0
      %p151 = por %p149, %p150
      %p152 = scmp.ne.s32.totalorder %s140, %s141
      %p153 = scmp.eq.s32.totalorder %s26, 1
      %p154 = por %p152, %p153
      %p156 = scmp.ne.s32.totalorder %s141, %s155
      %p157 = scmp.eq.s32.totalorder %s26, 0
      %p158 = por %p156, %p157
      %s160 = sadd.s32 %s159, 1
      %p163 = scmp.eq.s32.totalorder %s20, 1
      %p164 = scmp.ne.s32.totalorder %s159, %s161
      %p165 = scmp.eq.s32.totalorder %s20, 0
      %p166 = por %p164, %p165
      %p167 = scmp.ne.s32.totalorder %s159, %s161
      %p168 = scmp.eq.s32.totalorder %s25, 1
      %p169 = por %p167, %p168
      %p170 = scmp.ne.s32.totalorder %s161, %s162
      %p171 = scmp.eq.s32.totalorder %s25, 0
      %p172 = por %p170, %p171
      %p173 = scmp.ne.s32.totalorder %s161, %s162
      %p174 = scmp.eq.s32.totalorder %s26, 1
      %p175 = por %p173, %p174
      %p177 = scmp.ne.s32.totalorder %s162, %s176
      %p178 = scmp.eq.s32.totalorder %s26, 0
      %p179 = por %p177, %p178
      %s180 = ssub.s32 %s20, %s27
      %p181 = scmp.eq.s32.totalorder %s180, 0
      %s183 = sadd.s32 %s182, 1
      %s184 = scalar_select %p181, %s182, %s183
      %p187 = pneg %p181
      %p188 = scmp.eq.s32.totalorder %s20, 1
      %p189 = por %p187, %p188
      %p190 = scmp.ne.s32.totalorder %s182, %s185
      %p191 = scmp.eq.s32.totalorder %s20, 0
      %p192 = por %p190, %p191
      %p193 = scmp.ne.s32.totalorder %s182, %s185
      %p194 = scmp.eq.s32.totalorder %s25, 1
      %p195 = por %p193, %p194
      %p196 = scmp.ne.s32.totalorder %s185, %s186
      %p197 = scmp.eq.s32.totalorder %s25, 0
      %p198 = por %p196, %p197
      %p199 = scmp.ne.s32.totalorder %s185, %s186
      %p200 = scmp.eq.s32.totalorder %s26, 1
      %p201 = por %p199, %p200
      %p203 = scmp.ne.s32.totalorder %s186, %s202
      %p204 = scmp.eq.s32.totalorder %s26, 0
      %p205 = por %p203, %p204
      %p206 = scmp.le.s32.totalorder 1, %s20
      %p207 = scmp.lt.s32.totalorder %s20, 3
      %p208 = pnand %p206, %p207
      %p209 = pneg %p208
      // Predicated region
      $region9: #{tpu_custom_call.1} parent=5 // pred_check
        _
      $region10: #{tpu_custom_call.1} parent=5 // pred_check_branch
        %211 = sbr.rel (%p208) target = $region12
      $region11: #{tpu_custom_call.1} parent=5 // pred_region
        %s212 = ssub.s32 %s20, 1
        // Predicated region
        $region13: #{tpu_custom_call.1} parent=11 // pred_check
          %p213 = pneg %p67
        $region14: #{tpu_custom_call.1} parent=11 // pred_check_branch
          %215 = sbr.rel (%p213) target = $region16
        $region15: #{tpu_custom_call.1} parent=11 // pred_region
          _
        $region16: #{tpu_custom_call.1} parent=11 // pred_fallthru
          _
        // Predicated region
        $region17: #{tpu_custom_call.1} parent=11 // pred_check
          %p216 = pneg %p88
        $region18: #{tpu_custom_call.1} parent=11 // pred_check_branch
          %218 = sbr.rel (%p216) target = $region20
        $region19: #{tpu_custom_call.1} parent=11 // pred_region
          _
        $region20: #{tpu_custom_call.1} parent=11 // pred_fallthru
          _
        // Predicated region
        $region21: #{tpu_custom_call.1} parent=11 // pred_check
          %p219 = pneg %p109
        $region22: #{tpu_custom_call.1} parent=11 // pred_check_branch
          %221 = sbr.rel (%p219) target = $region24
        $region23: #{tpu_custom_call.1} parent=11 // pred_region
          %s223 = ssub.s32 4096, 4096
          %224 = vsyncadd [#allocation6], %s223
          %s225 = sshll.u32 [#allocation5], 4
          %s226 = int_to_ptr.vmem [resolvable:$true] %s225
          %231 = dma.hbm_to_vmem [thread:$0]  %s3, 4096, %s226, [#allocation6], 256, 256, 16
        $region24: #{tpu_custom_call.1} parent=11 // pred_fallthru
          _
        // Predicated region
        $region25: #{tpu_custom_call.1} parent=11 // pred_check
          %p232 = pneg %p130
        $region26: #{tpu_custom_call.1} parent=11 // pred_check_branch
          %234 = sbr.rel (%p232) target = $region28
        $region27: #{tpu_custom_call.1} parent=11 // pred_region
          _
        $region28: #{tpu_custom_call.1} parent=11 // pred_fallthru
          _
        // Predicated region
        $region29: #{tpu_custom_call.1} parent=11 // pred_check
          %p235 = pneg %p151
        $region30: #{tpu_custom_call.1} parent=11 // pred_check_branch
          %237 = sbr.rel (%p235) target = $region32
        $region31: #{tpu_custom_call.1} parent=11 // pred_region
          %s239 = ssub.s32 4096, 4096
          %240 = vsyncadd [#allocation6], %s239
          %s241 = sshll.u32 [#allocation7], 4
          %s242 = int_to_ptr.vmem [resolvable:$true] %s241
          %247 = dma.hbm_to_vmem [thread:$0]  %s5, 4096, %s242, [#allocation6], 128, 128, 8
        $region32: #{tpu_custom_call.1} parent=11 // pred_fallthru
          _
        // Predicated region
        $region33: #{tpu_custom_call.1} parent=11 // pred_check
          %p248 = pneg %p172
        $region34: #{tpu_custom_call.1} parent=11 // pred_check_branch
          %250 = sbr.rel (%p248) target = $region36
        $region35: #{tpu_custom_call.1} parent=11 // pred_region
          _
        $region36: #{tpu_custom_call.1} parent=11 // pred_fallthru
          _
      $region12: #{tpu_custom_call.1} parent=5 // pred_fallthru
        _
      %p251 = scmp.lt.s32.totalorder %s20, 2
      // Predicated region
      $region37: #{tpu_custom_call.1} parent=5 // pred_check
        %p252 = pneg %p251
      $region38: #{tpu_custom_call.1} parent=5 // pred_check_branch
        %254 = sbr.rel (%p252) target = $region40
      $region39: #{tpu_custom_call.1} parent=5 // pred_region
        // Predicated region
        $region41: #{tpu_custom_call.1} parent=39 // pred_check
          %p255 = pneg %p40
        $region42: #{tpu_custom_call.1} parent=39 // pred_check_branch
          %257 = sbr.rel (%p255) target = $region44
        $region43: #{tpu_custom_call.1} parent=39 // pred_region
          %s258 = sand.u32 %s30, 1
          %s259 = scalar_lea.sflag [#allocation3], %s258
          %s260 = sand.u32 %s30, 1
          %s261 = smul.addr %s260, 8
          %s262 = scalar_lea.vmem [#allocation2], %s261
          %s264 = ssub.s32 128, 128
          %265 = vsyncadd %s259, %s264
          %s266 = smul.addr %s20, 128
          %s267 = scalar_lea.hbm %s0, %s266
          %s269 = sshll.u32 %s262, 4
          %s270 = int_to_ptr.vmem [resolvable:$true] %s269
          %272 = dma.hbm_to_vmem [thread:$0]  %s267, 128, %s270, %s259
        $region44: #{tpu_custom_call.1} parent=39 // pred_fallthru
          _
      $region40: #{tpu_custom_call.1} parent=5 // pred_fallthru
        _
      %p273 = scmp.le.s32.totalorder 1, %s20
      %p274 = scmp.lt.s32.totalorder %s20, 3
      %p275 = pnand %p273, %p274
      %p276 = pneg %p275
      // Predicated region
      $region45: #{tpu_custom_call.1} parent=5 // pred_check
        _
      $region46: #{tpu_custom_call.1} parent=5 // pred_check_branch
        %278 = sbr.rel (%p275) target = $region48
      $region47: #{tpu_custom_call.1} parent=5 // pred_region
        %s279 = ssub.s32 %s20, 1
        %s280 = sand.u32 %s33, 1
        %s281 = scalar_lea.sflag [#allocation3], %s280
        %s282 = sand.u32 %s33, 1
        %s283 = smul.addr %s282, 8
        %s284 = scalar_lea.vmem [#allocation2], %s283
        // Predicated region
        $region49: #{tpu_custom_call.1} parent=47 // pred_check
          %p285 = pneg %p46
        $region50: #{tpu_custom_call.1} parent=47 // pred_check_branch
          %287 = sbr.rel (%p285) target = $region52
        $region51: #{tpu_custom_call.1} parent=47 // pred_region
          %288 = dma.done %s281, 128
        $region52: #{tpu_custom_call.1} parent=47 // pred_fallthru
          _
        // Predicated region
        $region53: #{tpu_custom_call.1} parent=47 // pred_check
          %p289 = pneg %p109
        $region54: #{tpu_custom_call.1} parent=47 // pred_check_branch
          %291 = sbr.rel (%p289) target = $region56
        $region55: #{tpu_custom_call.1} parent=47 // pred_region
          %292 = dma.done [#allocation6], 4096
        $region56: #{tpu_custom_call.1} parent=47 // pred_fallthru
          _
        // Predicated region
        $region57: #{tpu_custom_call.1} parent=47 // pred_check
          %p293 = pneg %p151
        $region58: #{tpu_custom_call.1} parent=47 // pred_check_branch
          %295 = sbr.rel (%p293) target = $region60
        $region59: #{tpu_custom_call.1} parent=47 // pred_region
          %296 = dma.done [#allocation6], 4096
        $region60: #{tpu_custom_call.1} parent=47 // pred_fallthru
          _
        %s297 = sand.u32 %s33, 1
        %s298 = scalar_lea.sflag [#allocation3], %s297
        %s299 = sand.u32 %s33, 1
        %s300 = smul.addr %s299, 8
        %s301 = scalar_lea.vmem [#allocation2], %s300
        %p302 = pneg %p46
        %p303 = pneg %p43
        %p304 = pneg %p67
        %p305 = pneg %p64
        %p306 = pneg %p88
        %p307 = pneg %p85
        %p308 = pneg %p109
        %p309 = pneg %p106
        %p310 = pneg %p130
        %p311 = pneg %p127
        %p312 = pneg %p151
        %p313 = pneg %p148
        %p314 = pneg %p172
        %p315 = pneg %p169
        %p316 = pneg %p198
        %p317 = pneg %p195
        %s318 = sand.u32 %s185, 1
        %s319 = scalar_lea.sflag [#allocation4], %s318
        %s320 = sand.u32 %s185, 1
        %s321 = smul.addr %s320, 8
        %s322 = scalar_lea.vmem [#allocation8], %s321
        %v323 = vld [vmem:[%s284] sm:$0xff]
        %324 = vadd.xlane.f32.xlu0 %v323
        %v325 = vpop.xlane.xlu0 %324
        %v326 = vrcp.pop 128.0
        %v327 = vmul.f32 %v325, %v326
        %v328 = vsub.f32 %v323, %v327
        %v329 = vmul.f32 %v328, %v328
        %330 = vadd.xlane.f32.xlu0 %v329
        %v331 = vpop.xlane.xlu0 %330
        %v332 = vmul.f32 %v331, %v326
        %v333 = vadd.f32 %v332, 1e-05
        %v334 = vrsqrt.pop %v333
        %v335 = vmul.f32 %v328, %v334
        %v336 = vld [vmem:[%s1] sm:$0x1]
        %v338 = vlaneseq
        %v339 = vshrl.u32 %v338, 7
        %v340 = vsub.s32 0, %v339
        %v341 = vrot.slane %v336, %v340
        %v343 = vmul.f32 %v335, %v341
        %v344 = vld [vmem:[%s2] sm:$0x1]
        %v346 = vlaneseq
        %v347 = vshrl.u32 %v346, 7
        %v348 = vsub.s32 0, %v347
        %v349 = vrot.slane %v344, %v348
        %v351 = vadd.f32 %v343, %v349
        %v352 = vld [vmem:[#allocation5] sm:$0xff]
        %v353 = vld [vmem:[#allocation5 + $0x8] sm:$0xff]
        %v354 = vld [vmem:[#allocation5 + $0x10] sm:$0xff]
        %v355 = vld [vmem:[#allocation5 + $0x18] sm:$0xff]
        %v356 = vld [vmem:[#allocation5 + $0x20] sm:$0xff]
        %v357 = vld [vmem:[#allocation5 + $0x28] sm:$0xff]
        %v358 = vld [vmem:[#allocation5 + $0x30] sm:$0xff]
        %v359 = vld [vmem:[#allocation5 + $0x38] sm:$0xff]
        %v360 = vld [vmem:[#allocation5 + $0x40] sm:$0xff]
        %v361 = vld [vmem:[#allocation5 + $0x48] sm:$0xff]
        %v362 = vld [vmem:[#allocation5 + $0x50] sm:$0xff]
        %v363 = vld [vmem:[#allocation5 + $0x58] sm:$0xff]
        %v364 = vld [vmem:[#allocation5 + $0x60] sm:$0xff]
        %v365 = vld [vmem:[#allocation5 + $0x68] sm:$0xff]
        %v366 = vld [vmem:[#allocation5 + $0x70] sm:$0xff]
        %v367 = vld [vmem:[#allocation5 + $0x78] sm:$0xff]
        %v368 = vld [vmem:[#allocation5 + $0x80] sm:$0xff]
        %v369 = vld [vmem:[#allocation5 + $0x88] sm:$0xff]
        %v370 = vld [vmem:[#allocation5 + $0x90] sm:$0xff]
        %v371 = vld [vmem:[#allocation5 + $0x98] sm:$0xff]
        %v372 = vld [vmem:[#allocation5 + $0xa0] sm:$0xff]
        %v373 = vld [vmem:[#allocation5 + $0xa8] sm:$0xff]
        %v374 = vld [vmem:[#allocation5 + $0xb0] sm:$0xff]
        %v375 = vld [vmem:[#allocation5 + $0xb8] sm:$0xff]
        %v376 = vld [vmem:[#allocation5 + $0xc0] sm:$0xff]
        %v377 = vld [vmem:[#allocation5 + $0xc8] sm:$0xff]
        %v378 = vld [vmem:[#allocation5 + $0xd0] sm:$0xff]
        %v379 = vld [vmem:[#allocation5 + $0xd8] sm:$0xff]
        %v380 = vld [vmem:[#allocation5 + $0xe0] sm:$0xff]
        %v381 = vld [vmem:[#allocation5 + $0xe8] sm:$0xff]
        %v382 = vld [vmem:[#allocation5 + $0xf0] sm:$0xff]
        %v383 = vld [vmem:[#allocation5 + $0xf8] sm:$0xff]
        %v384 = vld [vmem:[%s4] sm:$0x3]
        %v386 = vlaneseq
        %v387 = vshrl.u32 %v386, 7
        %v388 = vsub.s32 0, %v387
        %v389 = vrot.slane %v384, %v388
        %v390 = vlaneseq
        %v391 = vshrl.u32 %v390, 7
        %v392 = vsub.s32 1, %v391
        %v393 = vrot.slane %v384, %v392
        %396 = vmatprep.subr.mxu0 %v353
        %397 = vmatpush1.msra.mxu0 %v352
        %398 = vmatprep.subr.mxu0 %v355
        %399 = vmatpush1.msra.mxu0 %v354
        %400 = vmatprep.subr.mxu0 %v357
        %401 = vmatpush1.msra.mxu0 %v356
        %402 = vmatprep.subr.mxu0 %v359
        %403 = vmatpush1.msra.mxu0 %v358
        %404 = vmatprep.subr.mxu0 %v361
        %405 = vmatpush1.msra.mxu0 %v360
        %406 = vmatprep.subr.mxu0 %v363
        %407 = vmatpush1.msra.mxu0 %v362
        %408 = vmatprep.subr.mxu0 %v365
        %409 = vmatpush1.msra.mxu0 %v364
        %410 = vmatprep.subr.mxu0 %v367
        %411 = vmatpush1.msra.mxu0 %v366
        %412 = vmatprep.subr.mxu0 %v369
        %413 = vmatpush1.msra.mxu0 %v368
        %414 = vmatprep.subr.mxu0 %v371
        %415 = vmatpush1.msra.mxu0 %v370
        %416 = vmatprep.subr.mxu0 %v373
        %417 = vmatpush1.msra.mxu0 %v372
        %418 = vmatprep.subr.mxu0 %v375
        %419 = vmatpush1.msra.mxu0 %v374
        %420 = vmatprep.subr.mxu0 %v377
        %421 = vmatpush1.msra.mxu0 %v376
        %422 = vmatprep.subr.mxu0 %v379
        %423 = vmatpush1.msra.mxu0 %v378
        %424 = vmatprep.subr.mxu0 %v381
        %425 = vmatpush1.msra.mxu0 %v380
        %426 = vmatprep.subr.mxu0 %v383
        %427 = vmatpush1.msra.mxu0 %v382
        %428 = vmatprep.subr.mxu0 0.0
        %429 = vmatpush1.msra.mxu0 0.0
        %430 = vmatprep.subr.mxu0 0.0
        %431 = vmatpush1.msra.mxu0 0.0
        %432 = vmatprep.subr.mxu0 0.0
        %433 = vmatpush1.msra.mxu0 0.0
        %434 = vmatprep.subr.mxu0 0.0
        %435 = vmatpush1.msra.mxu0 0.0
        %436 = vmatprep.subr.mxu0 0.0
        %437 = vmatpush1.msra.mxu0 0.0
        %438 = vmatprep.subr.mxu0 0.0
        %439 = vmatpush1.msra.mxu0 0.0
        %440 = vmatprep.subr.mxu0 0.0
        %441 = vmatpush1.msra.mxu0 0.0
        %442 = vmatprep.subr.mxu0 0.0
        %443 = vmatpush1.msra.mxu0 0.0
        %444 = vmatprep.subr.mxu0 0.0
        %445 = vmatpush1.msra.mxu0 0.0
        %446 = vmatprep.subr.mxu0 0.0
        %447 = vmatpush1.msra.mxu0 0.0
        %448 = vmatprep.subr.mxu0 0.0
        %449 = vmatpush1.msra.mxu0 0.0
        %450 = vmatprep.subr.mxu0 0.0
        %451 = vmatpush1.msra.mxu0 0.0
        %452 = vmatprep.subr.mxu0 0.0
        %453 = vmatpush1.msra.mxu0 0.0
        %454 = vmatprep.subr.mxu0 0.0
        %455 = vmatpush1.msra.mxu0 0.0
        %456 = vmatprep.subr.mxu0 0.0
        %457 = vmatpush1.msra.mxu0 0.0
        %458 = vmatprep.subr.mxu0 0.0
        %459 = vmatpush1.msra.mxu0 0.0
        %460 = vmatprep.mubr.f32.mxu0 0.0
        %461 = vmatmul.mubr.f32.gmra.mrb[0].mxu0 %v351
        %v462 = vpop.f32.mrb[0].mxu0
        %v463 = vadd.f32 %v389, %v462
        %v464 = vpop.f32.mrb[0].mxu0
        %v465 = vadd.f32 %v393, %v464
        %466 = vdwg.mxu0
        %v467 = vmul.f32 %v463, 0.5
        %v468 = vmul.f32 %v465, 0.5
        %v469 = vmul.f32 %v463, 0.70710677
        %v470 = vmul.f32 %v465, 0.70710677
        %v471 = verf.f32.pop %v469
        %v472 = verf.f32.pop %v470
        %v473 = vadd.f32 %v471, 1.0
        %v474 = vadd.f32 %v472, 1.0
        %v475 = vmul.f32 %v467, %v473
        %v476 = vmul.f32 %v468, %v474
        %v477 = vld [vmem:[#allocation7] sm:$0xff]
        %v478 = vld [vmem:[#allocation7 + $0x8] sm:$0xff]
        %v479 = vld [vmem:[#allocation7 + $0x10] sm:$0xff]
        %v480 = vld [vmem:[#allocation7 + $0x18] sm:$0xff]
        %v481 = vld [vmem:[#allocation7 + $0x20] sm:$0xff]
        %v482 = vld [vmem:[#allocation7 + $0x28] sm:$0xff]
        %v483 = vld [vmem:[#allocation7 + $0x30] sm:$0xff]
        %v484 = vld [vmem:[#allocation7 + $0x38] sm:$0xff]
        %v485 = vld [vmem:[#allocation7 + $0x40] sm:$0xff]
        %v486 = vld [vmem:[#allocation7 + $0x48] sm:$0xff]
        %v487 = vld [vmem:[#allocation7 + $0x50] sm:$0xff]
        %v488 = vld [vmem:[#allocation7 + $0x58] sm:$0xff]
        %v489 = vld [vmem:[#allocation7 + $0x60] sm:$0xff]
        %v490 = vld [vmem:[#allocation7 + $0x68] sm:$0xff]
        %v491 = vld [vmem:[#allocation7 + $0x70] sm:$0xff]
        %v492 = vld [vmem:[#allocation7 + $0x78] sm:$0xff]
        %v493 = vld [vmem:[#allocation7 + $0x80] sm:$0xff]
        %v494 = vld [vmem:[#allocation7 + $0x88] sm:$0xff]
        %v495 = vld [vmem:[#allocation7 + $0x90] sm:$0xff]
        %v496 = vld [vmem:[#allocation7 + $0x98] sm:$0xff]
        %v497 = vld [vmem:[#allocation7 + $0xa0] sm:$0xff]
        %v498 = vld [vmem:[#allocation7 + $0xa8] sm:$0xff]
        %v499 = vld [vmem:[#allocation7 + $0xb0] sm:$0xff]
        %v500 = vld [vmem:[#allocation7 + $0xb8] sm:$0xff]
        %v501 = vld [vmem:[#allocation7 + $0xc0] sm:$0xff]
        %v502 = vld [vmem:[#allocation7 + $0xc8] sm:$0xff]
        %v503 = vld [vmem:[#allocation7 + $0xd0] sm:$0xff]
        %v504 = vld [vmem:[#allocation7 + $0xd8] sm:$0xff]
        %v505 = vld [vmem:[#allocation7 + $0xe0] sm:$0xff]
        %v506 = vld [vmem:[#allocation7 + $0xe8] sm:$0xff]
        %v507 = vld [vmem:[#allocation7 + $0xf0] sm:$0xff]
        %v508 = vld [vmem:[#allocation7 + $0xf8] sm:$0xff]
        %v509 = vld [vmem:[%s6] sm:$0x1]
        %v511 = vlaneseq
        %v512 = vshrl.u32 %v511, 7
        %v513 = vsub.s32 0, %v512
        %v514 = vrot.slane %v509, %v513
        %516 = vmatprep.subr.mxu0 0.0
        %517 = vmatpush1.msra.mxu0 %v477
        %518 = vmatprep.subr.mxu0 0.0
        %519 = vmatpush1.msra.mxu0 %v478
        %520 = vmatprep.subr.mxu0 0.0
        %521 = vmatpush1.msra.mxu0 %v479
        %522 = vmatprep.subr.mxu0 0.0
        %523 = vmatpush1.msra.mxu0 %v480
        %524 = vmatprep.subr.mxu0 0.0
        %525 = vmatpush1.msra.mxu0 %v481
        %526 = vmatprep.subr.mxu0 0.0
        %527 = vmatpush1.msra.mxu0 %v482
        %528 = vmatprep.subr.mxu0 0.0
        %529 = vmatpush1.msra.mxu0 %v483
        %530 = vmatprep.subr.mxu0 0.0
        %531 = vmatpush1.msra.mxu0 %v484
        %532 = vmatprep.subr.mxu0 0.0
        %533 = vmatpush1.msra.mxu0 %v485
        %534 = vmatprep.subr.mxu0 0.0
        %535 = vmatpush1.msra.mxu0 %v486
        %536 = vmatprep.subr.mxu0 0.0
        %537 = vmatpush1.msra.mxu0 %v487
        %538 = vmatprep.subr.mxu0 0.0
        %539 = vmatpush1.msra.mxu0 %v488
        %540 = vmatprep.subr.mxu0 0.0
        %541 = vmatpush1.msra.mxu0 %v489
        %542 = vmatprep.subr.mxu0 0.0
        %543 = vmatpush1.msra.mxu0 %v490
        %544 = vmatprep.subr.mxu0 0.0
        %545 = vmatpush1.msra.mxu0 %v491
        %546 = vmatprep.subr.mxu0 0.0
        %547 = vmatpush1.msra.mxu0 %v492
        %548 = vmatprep.subr.mxu0 0.0
        %549 = vmatpush1.msra.mxu0 %v493
        %550 = vmatprep.subr.mxu0 0.0
        %551 = vmatpush1.msra.mxu0 %v494
        %552 = vmatprep.subr.mxu0 0.0
        %553 = vmatpush1.msra.mxu0 %v495
        %554 = vmatprep.subr.mxu0 0.0
        %555 = vmatpush1.msra.mxu0 %v496
        %556 = vmatprep.subr.mxu0 0.0
        %557 = vmatpush1.msra.mxu0 %v497
        %558 = vmatprep.subr.mxu0 0.0
        %559 = vmatpush1.msra.mxu0 %v498
        %560 = vmatprep.subr.mxu0 0.0
        %561 = vmatpush1.msra.mxu0 %v499
        %562 = vmatprep.subr.mxu0 0.0
        %563 = vmatpush1.msra.mxu0 %v500
        %564 = vmatprep.subr.mxu0 0.0
        %565 = vmatpush1.msra.mxu0 %v501
        %566 = vmatprep.subr.mxu0 0.0
        %567 = vmatpush1.msra.mxu0 %v502
        %568 = vmatprep.subr.mxu0 0.0
        %569 = vmatpush1.msra.mxu0 %v503
        %570 = vmatprep.subr.mxu0 0.0
        %571 = vmatpush1.msra.mxu0 %v504
        %572 = vmatprep.subr.mxu0 0.0
        %573 = vmatpush1.msra.mxu0 %v505
        %574 = vmatprep.subr.mxu0 0.0
        %575 = vmatpush1.msra.mxu0 %v506
        %576 = vmatprep.subr.mxu0 0.0
        %577 = vmatpush1.msra.mxu0 %v507
        %578 = vmatprep.subr.mxu0 0.0
        %579 = vmatpush1.msra.mxu0 %v508
        %580 = vmatprep.mubr.f32.mxu0 %v476
        %581 = vmatmul.mubr.f32.gmra.mrb[0].mxu0 %v475
        %v582 = vpop.f32.mrb[0].mxu0
        %v583 = vadd.f32 %v514, %v582
        %v584 = vpop.f32.mrb[0].mxu0
        %585 = vdwg.mxu0
        %586 = vst [vmem:[%s322] sm:$0xff] %v583
        %s587 = sand.u32 %s185, 1
        %s588 = scalar_lea.sflag [#allocation4], %s587
        %s589 = sand.u32 %s185, 1
        %s590 = smul.addr %s589, 8
        %s591 = scalar_lea.vmem [#allocation8], %s590
        // Predicated region
        $region61: #{tpu_custom_call.1} parent=47 // pred_check
          %p592 = pneg %p195
        $region62: #{tpu_custom_call.1} parent=47 // pred_check_branch
          %594 = sbr.rel (%p592) target = $region64
        $region63: #{tpu_custom_call.1} parent=47 // pred_region
          %s596 = ssub.s32 128, 128
          %597 = vsyncadd %s588, %s596
          %s598 = smul.addr %s25, 128
          %s599 = scalar_lea.hbm %s7, %s598
          %s601 = sshll.u32 %s591, 4
          %s602 = int_to_ptr.vmem [resolvable:$true] %s601
          %604 = dma.vmem_to_hbm [thread:$0]  %s602, 128, %s599, %s588
        $region64: #{tpu_custom_call.1} parent=47 // pred_fallthru
          _
      $region48: #{tpu_custom_call.1} parent=5 // pred_fallthru
        _
      %p605 = scmp.le.s32.totalorder 2, %s20
      // Predicated region
      $region65: #{tpu_custom_call.1} parent=5 // pred_check
        %p606 = pneg %p605
      $region66: #{tpu_custom_call.1} parent=5 // pred_check_branch
        %608 = sbr.rel (%p606) target = $region68
      $region67: #{tpu_custom_call.1} parent=5 // pred_region
        %s609 = ssub.s32 %s20, 2
        // Predicated region
        $region69: #{tpu_custom_call.1} parent=67 // pred_check
          %p610 = pneg %p201
        $region70: #{tpu_custom_call.1} parent=67 // pred_check_branch
          %612 = sbr.rel (%p610) target = $region72
        $region71: #{tpu_custom_call.1} parent=67 // pred_region
          %s613 = sand.u32 %s186, 1
          %s614 = scalar_lea.sflag [#allocation4], %s613
          %s615 = sand.u32 %s186, 1
          %s616 = smul.addr %s615, 8
          %s617 = scalar_lea.vmem [#allocation8], %s616
          %618 = dma.done %s614, 128
        $region72: #{tpu_custom_call.1} parent=67 // pred_fallthru
          _
      $region68: #{tpu_custom_call.1} parent=5 // pred_fallthru
        _
    $region6: #{tpu_custom_call.1} parent=1 // loop_footer
      %s24 = sadd.s32 1, %s20
    $region7: #{tpu_custom_call.1} parent=1 // loop_footer_branch
      %19 = sbr.rel target = $region3
    $region8: #{tpu_custom_call.1} parent=1 // loop_exit
      _
    %619 = vsyncpa [#allocation3], 1
    %s620 = scalar_lea.sflag [#allocation3], 1
    %621 = vsyncpa %s620, 1
    %622 = vsyncpa [#allocation6], 1
    %623 = vsyncpa [#allocation4], 1
    %s624 = scalar_lea.sflag [#allocation4], 1
    %625 = vsyncpa %s624, 1

// kernel: tpu_custom_call.1
$region0: #{tpu_custom_call.1}
  #allocation0 [shape = 'u32[]', space=smem, size = 0x4, offset = 0x4, fixed_abs, tag = 'smem constant byte address 0x4 - core index']
  #allocation1 [shape = 'u32[144,128]{1,0:T(1,128)}', space=vmem, size = 0x12000, scoped, tag = 'internal scratch']
  %s0 = inlined_call_operand.hbm [shape: f32[16,128], index: 0, kind: input, shape index: {}]
  %s1 = inlined_call_operand.vmem [shape: f32[1,128], index: 1, kind: input, shape index: {}]
  %s2 = inlined_call_operand.vmem [shape: f32[1,128], index: 2, kind: input, shape index: {}]
  %s3 = inlined_call_operand.hbm [shape: f32[128,256], index: 3, kind: input, shape index: {}]
  %s4 = inlined_call_operand.vmem [shape: f32[1,256], index: 4, kind: input, shape index: {}]
  %s5 = inlined_call_operand.hbm [shape: f32[256,128], index: 5, kind: input, shape index: {}]
  %s6 = inlined_call_operand.vmem [shape: f32[1,128], index: 6, kind: input, shape index: {}]
  %s7 = inlined_call_operand.hbm [shape: f32[16,128], index: 7, kind: output, shape index: {}]
  %s8 = sld [smem:[#allocation0]]
  $region73: #{tpu_custom_call.1} parent=0
    _
  %s10 = ssub.s32 1, %s8
  %s11 = scalar_select 0, %s10, %s8
  $region1: #{tpu_custom_call.1} parent=0
    #allocation2 [shape = 'u8[8192]{0}', space=vmem, size = 0x2000, scoped, tag = 'input window, operand 0']
    #allocation3 [shape = 's32[2]{0}', space=sflag, size = 0x8, scoped, tag = 'scoped memory for tpu_custom_call.1']
    #allocation4 [shape = 's32[2]{0}', space=sflag, size = 0x8, scoped, tag = 'scoped memory for tpu_custom_call.1']
    #allocation5 [shape = 'u8[131072]{0}', space=vmem, size = 0x20000, scoped, tag = 'input window, operand 3, single buffered']
    #allocation6 [shape = 's32[1]{0}', space=sflag, size = 0x4, scoped, tag = 'scoped memory for tpu_custom_call.1']
    #allocation7 [shape = 'u8[131072]{0}', space=vmem, size = 0x20000, scoped, tag = 'input window, operand 5, single buffered']
    #allocation8 [shape = 'u8[8192]{0}', space=vmem, size = 0x2000, scoped, tag = 'output window, operand 0']
    %12 = vsyncpa [#allocation3], 0
    %s13 = scalar_lea.sflag [#allocation3], 1
    %14 = vsyncpa %s13, 0
    %15 = vsyncpa [#allocation6], 0
    %16 = vsyncpa [#allocation4], 0
    %s17 = scalar_lea.sflag [#allocation4], 1
    %18 = vsyncpa %s17, 0
    loop: start=0, step=1, limit=4
    $region2: #{tpu_custom_call.1} parent=1 // loop_pre_header
      _
    $region3: #{tpu_custom_call.1} parent=1 // loop_header
      %s20 = sphi 0, %s24
      %p21 = scmp.ge.s32.totalorder %s20, 4
      %s30 = sphi 0, %s32
      %s33 = sphi 0, %s30
      %s34 = sphi 0, %s33
      %s50 = sphi 0, %s34
      %s54 = sphi 0, %s54
      %s56 = sphi 0, %s54
      %s57 = sphi 0, %s56
      %s71 = sphi 0, %s57
      %s75 = sphi 0, %s75
      %s77 = sphi 0, %s75
      %s78 = sphi 0, %s77
      %s92 = sphi 0, %s78
      %s96 = sphi 0, %s96
      %s98 = sphi 0, %s96
      %s99 = sphi 0, %s98
      %s113 = sphi 0, %s99
      %s117 = sphi 0, %s117
      %s119 = sphi 0, %s117
      %s120 = sphi 0, %s119
      %s134 = sphi 0, %s120
      %s138 = sphi 0, %s138
      %s140 = sphi 0, %s138
      %s141 = sphi 0, %s140
      %s155 = sphi 0, %s141
      %s159 = sphi 0, %s159
      %s161 = sphi 0, %s159
      %s162 = sphi 0, %s161
      %s176 = sphi 0, %s162
      %s182 = sphi 0, %s184
      %s185 = sphi 0, %s182
      %s186 = sphi 0, %s185
      %s202 = sphi 0, %s186
    $region4: #{tpu_custom_call.1} parent=1 // loop_header_branch
      %23 = sbr.rel (%p21) target = $region8
    $region5: #{tpu_custom_call.1} parent=1 // loop_body
      %s25 = ssub.s32 %s20, 1
      %s26 = ssub.s32 %s20, 2
      %s27 = sadd.s32 %s20, 1
      %s28 = ssub.s32 %s20, %s27
      %p29 = scmp.eq.s32.totalorder %s28, 0
      %s31 = sadd.s32 %s30, 1
      %s32 = scalar_select %p29, %s30, %s31
      %p35 = pneg %p29
      %p36 = scmp.eq.s32.totalorder %s20, 1
      %p37 = por %p35, %p36
      %p38 = scmp.ne.s32.totalorder %s30, %s33
      %p39 = scmp.eq.s32.totalorder %s20, 0
      %p40 = por %p38, %p39
      %p41 = scmp.ne.s32.totalorder %s30, %s33
      %p42 = scmp.eq.s32.totalorder %s25, 1
      %p43 = por %p41, %p42
      %p44 = scmp.ne.s32.totalorder %s33, %s34
      %p45 = scmp.eq.s32.totalorder %s25, 0
      %p46 = por %p44, %p45
      %p47 = scmp.ne.s32.totalorder %s33, %s34
      %p48 = scmp.eq.s32.totalorder %s26, 1
      %p49 = por %p47, %p48
      %p51 = scmp.ne.s32.totalorder %s34, %s50
      %p52 = scmp.eq.s32.totalorder %s26, 0
      %p53 = por %p51, %p52
      %s55 = sadd.s32 %s54, 1
      %p58 = scmp.eq.s32.totalorder %s20, 1
      %p59 = scmp.ne.s32.totalorder %s54, %s56
      %p60 = scmp.eq.s32.totalorder %s20, 0
      %p61 = por %p59, %p60
      %p62 = scmp.ne.s32.totalorder %s54, %s56
      %p63 = scmp.eq.s32.totalorder %s25, 1
      %p64 = por %p62, %p63
      %p65 = scmp.ne.s32.totalorder %s56, %s57
      %p66 = scmp.eq.s32.totalorder %s25, 0
      %p67 = por %p65, %p66
      %p68 = scmp.ne.s32.totalorder %s56, %s57
      %p69 = scmp.eq.s32.totalorder %s26, 1
      %p70 = por %p68, %p69
      %p72 = scmp.ne.s32.totalorder %s57, %s71
      %p73 = scmp.eq.s32.totalorder %s26, 0
      %p74 = por %p72, %p73
      %s76 = sadd.s32 %s75, 1
      %p79 = scmp.eq.s32.totalorder %s20, 1
      %p80 = scmp.ne.s32.totalorder %s75, %s77
      %p81 = scmp.eq.s32.totalorder %s20, 0
      %p82 = por %p80, %p81
      %p83 = scmp.ne.s32.totalorder %s75, %s77
      %p84 = scmp.eq.s32.totalorder %s25, 1
      %p85 = por %p83, %p84
      %p86 = scmp.ne.s32.totalorder %s77, %s78
      %p87 = scmp.eq.s32.totalorder %s25, 0
      %p88 = por %p86, %p87
      %p89 = scmp.ne.s32.totalorder %s77, %s78
      %p90 = scmp.eq.s32.totalorder %s26, 1
      %p91 = por %p89, %p90
      %p93 = scmp.ne.s32.totalorder %s78, %s92
      %p94 = scmp.eq.s32.totalorder %s26, 0
      %p95 = por %p93, %p94
      %s97 = sadd.s32 %s96, 1
      %p100 = scmp.eq.s32.totalorder %s20, 1
      %p101 = scmp.ne.s32.totalorder %s96, %s98
      %p102 = scmp.eq.s32.totalorder %s20, 0
      %p103 = por %p101, %p102
      %p104 = scmp.ne.s32.totalorder %s96, %s98
      %p105 = scmp.eq.s32.totalorder %s25, 1
      %p106 = por %p104, %p105
      %p107 = scmp.ne.s32.totalorder %s98, %s99
      %p108 = scmp.eq.s32.totalorder %s25, 0
      %p109 = por %p107, %p108
      %p110 = scmp.ne.s32.totalorder %s98, %s99
      %p111 = scmp.eq.s32.totalorder %s26, 1
      %p112 = por %p110, %p111
      %p114 = scmp.ne.s32.totalorder %s99, %s113
      %p115 = scmp.eq.s32.totalorder %s26, 0
      %p116 = por %p114, %p115
      %s118 = sadd.s32 %s117, 1
      %p121 = scmp.eq.s32.totalorder %s20, 1
      %p122 = scmp.ne.s32.totalorder %s117, %s119
      %p123 = scmp.eq.s32.totalorder %s20, 0
      %p124 = por %p122, %p123
      %p125 = scmp.ne.s32.totalorder %s117, %s119
      %p126 = scmp.eq.s32.totalorder %s25, 1
      %p127 = por %p125, %p126
      %p128 = scmp.ne.s32.totalorder %s119, %s120
      %p129 = scmp.eq.s32.totalorder %s25, 0
      %p130 = por %p128, %p129
      %p131 = scmp.ne.s32.totalorder %s119, %s120
      %p132 = scmp.eq.s32.totalorder %s26, 1
      %p133 = por %p131, %p132
      %p135 = scmp.ne.s32.totalorder %s120, %s134
      %p136 = scmp.eq.s32.totalorder %s26, 0
      %p137 = por %p135, %p136
      %s139 = sadd.s32 %s138, 1
      %p142 = scmp.eq.s32.totalorder %s20, 1
      %p143 = scmp.ne.s32.totalorder %s138, %s140
      %p144 = scmp.eq.s32.totalorder %s20, 0
      %p145 = por %p143, %p144
      %p146 = scmp.ne.s32.totalorder %s138, %s140
      %p147 = scmp.eq.s32.totalorder %s25, 1
      %p148 = por %p146, %p147
      %p149 = scmp.ne.s32.totalorder %s140, %s141
      %p150 = scmp.eq.s32.totalorder %s25, 0
      %p151 = por %p149, %p150
      %p152 = scmp.ne.s32.totalorder %s140, %s141
      %p153 = scmp.eq.s32.totalorder %s26, 1
      %p154 = por %p152, %p153
      %p156 = scmp.ne.s32.totalorder %s141, %s155
      %p157 = scmp.eq.s32.totalorder %s26, 0
      %p158 = por %p156, %p157
      %s160 = sadd.s32 %s159, 1
      %p163 = scmp.eq.s32.totalorder %s20, 1
      %p164 = scmp.ne.s32.totalorder %s159, %s161
      %p165 = scmp.eq.s32.totalorder %s20, 0
      %p166 = por %p164, %p165
      %p167 = scmp.ne.s32.totalorder %s159, %s161
      %p168 = scmp.eq.s32.totalorder %s25, 1
      %p169 = por %p167, %p168
      %p170 = scmp.ne.s32.totalorder %s161, %s162
      %p171 = scmp.eq.s32.totalorder %s25, 0
      %p172 = por %p170, %p171
      %p173 = scmp.ne.s32.totalorder %s161, %s162
      %p174 = scmp.eq.s32.totalorder %s26, 1
      %p175 = por %p173, %p174
      %p177 = scmp.ne.s32.totalorder %s162, %s176
      %p178 = scmp.eq.s32.totalorder %s26, 0
      %p179 = por %p177, %p178
      %s180 = ssub.s32 %s20, %s27
      %p181 = scmp.eq.s32.totalorder %s180, 0
      %s183 = sadd.s32 %s182, 1
      %s184 = scalar_select %p181, %s182, %s183
      %p187 = pneg %p181
      %p188 = scmp.eq.s32.totalorder %s20, 1
      %p189 = por %p187, %p188
      %p190 = scmp.ne.s32.totalorder %s182, %s185
      %p191 = scmp.eq.s32.totalorder %s20, 0
      %p192 = por %p190, %p191
      %p193 = scmp.ne.s32.totalorder %s182, %s185
      %p194 = scmp.eq.s32.totalorder %s25, 1
      %p195 = por %p193, %p194
      %p196 = scmp.ne.s32.totalorder %s185, %s186
      %p197 = scmp.eq.s32.totalorder %s25, 0
      %p198 = por %p196, %p197
      %p199 = scmp.ne.s32.totalorder %s185, %s186
      %p200 = scmp.eq.s32.totalorder %s26, 1
      %p201 = por %p199, %p200
      %p203 = scmp.ne.s32.totalorder %s186, %s202
      %p204 = scmp.eq.s32.totalorder %s26, 0
      %p205 = por %p203, %p204
      %p206 = scmp.le.s32.totalorder 1, %s20
      %p207 = scmp.lt.s32.totalorder %s20, 3
      %p208 = pnand %p206, %p207
      %p209 = pneg %p208
      // Predicated region
      $region9: #{tpu_custom_call.1} parent=5 // pred_check
        _
      $region10: #{tpu_custom_call.1} parent=5 // pred_check_branch
        %211 = sbr.rel (%p208) target = $region12
      $region11: #{tpu_custom_call.1} parent=5 // pred_region
        %s212 = ssub.s32 %s20, 1
        // Predicated region
        $region13: #{tpu_custom_call.1} parent=11 // pred_check
          %p213 = pneg %p67
        $region14: #{tpu_custom_call.1} parent=11 // pred_check_branch
          %215 = sbr.rel (%p213) target = $region16
        $region15: #{tpu_custom_call.1} parent=11 // pred_region
          _
        $region16: #{tpu_custom_call.1} parent=11 // pred_fallthru
          _
        // Predicated region
        $region17: #{tpu_custom_call.1} parent=11 // pred_check
          %p216 = pneg %p88
        $region18: #{tpu_custom_call.1} parent=11 // pred_check_branch
          %218 = sbr.rel (%p216) target = $region20
        $region19: #{tpu_custom_call.1} parent=11 // pred_region
          _
        $region20: #{tpu_custom_call.1} parent=11 // pred_fallthru
          _
        // Predicated region
        $region21: #{tpu_custom_call.1} parent=11 // pred_check
          %p219 = pneg %p109
        $region22: #{tpu_custom_call.1} parent=11 // pred_check_branch
          %221 = sbr.rel (%p219) target = $region24
        $region23: #{tpu_custom_call.1} parent=11 // pred_region
          %s223 = ssub.s32 4096, 4096
          %224 = vsyncadd [#allocation6], %s223
          %s225 = sshll.u32 [#allocation5], 4
          %s226 = int_to_ptr.vmem [resolvable:$true] %s225
          %231 = dma.hbm_to_vmem [thread:$0]  %s3, 4096, %s226, [#allocation6], 256, 256, 16
        $region24: #{tpu_custom_call.1} parent=11 // pred_fallthru
          _
        // Predicated region
        $region25: #{tpu_custom_call.1} parent=11 // pred_check
          %p232 = pneg %p130
        $region26: #{tpu_custom_call.1} parent=11 // pred_check_branch
          %234 = sbr.rel (%p232) target = $region28
        $region27: #{tpu_custom_call.1} parent=11 // pred_region
          _
        $region28: #{tpu_custom_call.1} parent=11 // pred_fallthru
          _
        // Predicated region
        $region29: #{tpu_custom_call.1} parent=11 // pred_check
          %p235 = pneg %p151
        $region30: #{tpu_custom_call.1} parent=11 // pred_check_branch
          %237 = sbr.rel (%p235) target = $region32
        $region31: #{tpu_custom_call.1} parent=11 // pred_region
          %s239 = ssub.s32 4096, 4096
          %240 = vsyncadd [#allocation6], %s239
          %s241 = sshll.u32 [#allocation7], 4
          %s242 = int_to_ptr.vmem [resolvable:$true] %s241
          %247 = dma.hbm_to_vmem [thread:$0]  %s5, 4096, %s242, [#allocation6], 128, 128, 8
        $region32: #{tpu_custom_call.1} parent=11 // pred_fallthru
          _
        // Predicated region
        $region33: #{tpu_custom_call.1} parent=11 // pred_check
          %p248 = pneg %p172
        $region34: #{tpu_custom_call.1} parent=11 // pred_check_branch
          %250 = sbr.rel (%p248) target = $region36
        $region35: #{tpu_custom_call.1} parent=11 // pred_region
          _
        $region36: #{tpu_custom_call.1} parent=11 // pred_fallthru
          _
      $region12: #{tpu_custom_call.1} parent=5 // pred_fallthru
        _
      %p251 = scmp.lt.s32.totalorder %s20, 2
      // Predicated region
      $region37: #{tpu_custom_call.1} parent=5 // pred_check
        %p252 = pneg %p251
      $region38: #{tpu_custom_call.1} parent=5 // pred_check_branch
        %254 = sbr.rel (%p252) target = $region40
      $region39: #{tpu_custom_call.1} parent=5 // pred_region
        // Predicated region
        $region41: #{tpu_custom_call.1} parent=39 // pred_check
          %p255 = pneg %p40
        $region42: #{tpu_custom_call.1} parent=39 // pred_check_branch
          %257 = sbr.rel (%p255) target = $region44
        $region43: #{tpu_custom_call.1} parent=39 // pred_region
          %s258 = sand.u32 %s30, 1
          %s259 = scalar_lea.sflag [#allocation3], %s258
          %s260 = sand.u32 %s30, 1
          %s261 = smul.addr %s260, 8
          %s262 = scalar_lea.vmem [#allocation2], %s261
          %s264 = ssub.s32 128, 128
          %265 = vsyncadd %s259, %s264
          %s266 = smul.addr %s20, 128
          %s267 = scalar_lea.hbm %s0, %s266
          %s269 = sshll.u32 %s262, 4
          %s270 = int_to_ptr.vmem [resolvable:$true] %s269
          %272 = dma.hbm_to_vmem [thread:$0]  %s267, 128, %s270, %s259
        $region44: #{tpu_custom_call.1} parent=39 // pred_fallthru
          _
      $region40: #{tpu_custom_call.1} parent=5 // pred_fallthru
        _
      %p273 = scmp.le.s32.totalorder 1, %s20
      %p274 = scmp.lt.s32.totalorder %s20, 3
      %p275 = pnand %p273, %p274
      %p276 = pneg %p275
      // Predicated region
      $region45: #{tpu_custom_call.1} parent=5 // pred_check
        _
      $region46: #{tpu_custom_call.1} parent=5 // pred_check_branch
        %278 = sbr.rel (%p275) target = $region48
      $region47: #{tpu_custom_call.1} parent=5 // pred_region
        %s279 = ssub.s32 %s20, 1
        %s280 = sand.u32 %s33, 1
        %s281 = scalar_lea.sflag [#allocation3], %s280
        %s282 = sand.u32 %s33, 1
        %s283 = smul.addr %s282, 8
        %s284 = scalar_lea.vmem [#allocation2], %s283
        // Predicated region
        $region49: #{tpu_custom_call.1} parent=47 // pred_check
          %p285 = pneg %p46
        $region50: #{tpu_custom_call.1} parent=47 // pred_check_branch
          %287 = sbr.rel (%p285) target = $region52
        $region51: #{tpu_custom_call.1} parent=47 // pred_region
          %288 = dma.done %s281, 128
        $region52: #{tpu_custom_call.1} parent=47 // pred_fallthru
          _
        // Predicated region
        $region53: #{tpu_custom_call.1} parent=47 // pred_check
          %p289 = pneg %p109
        $region54: #{tpu_custom_call.1} parent=47 // pred_check_branch
          %291 = sbr.rel (%p289) target = $region56
        $region55: #{tpu_custom_call.1} parent=47 // pred_region
          %292 = dma.done [#allocation6], 4096
        $region56: #{tpu_custom_call.1} parent=47 // pred_fallthru
          _
        // Predicated region
        $region57: #{tpu_custom_call.1} parent=47 // pred_check
          %p293 = pneg %p151
        $region58: #{tpu_custom_call.1} parent=47 // pred_check_branch
          %295 = sbr.rel (%p293) target = $region60
        $region59: #{tpu_custom_call.1} parent=47 // pred_region
          %296 = dma.done [#allocation6], 4096
        $region60: #{tpu_custom_call.1} parent=47 // pred_fallthru
          _
        %s297 = sand.u32 %s33, 1
        %s298 = scalar_lea.sflag [#allocation3], %s297
        %s299 = sand.u32 %s33, 1
        %s300 = smul.addr %s299, 8
        %s301 = scalar_lea.vmem [#allocation2], %s300
        %p302 = pneg %p46
        %p303 = pneg %p43
        %p304 = pneg %p67
        %p305 = pneg %p64
        %p306 = pneg %p88
        %p307 = pneg %p85
        %p308 = pneg %p109
        %p309 = pneg %p106
        %p310 = pneg %p130
        %p311 = pneg %p127
        %p312 = pneg %p151
        %p313 = pneg %p148
        %p314 = pneg %p172
        %p315 = pneg %p169
        %p316 = pneg %p198
        %p317 = pneg %p195
        %s318 = sand.u32 %s185, 1
        %s319 = scalar_lea.sflag [#allocation4], %s318
        %s320 = sand.u32 %s185, 1
        %s321 = smul.addr %s320, 8
        %s322 = scalar_lea.vmem [#allocation8], %s321
        %v323 = vld [vmem:[%s284] sm:$0xff]
        %324 = vadd.xlane.f32.xlu0 %v323
        %v325 = vpop.xlane.xlu0 %324
        %v326 = vrcp.pop 128.0
        %v327 = vmul.f32 %v325, %v326
        %v328 = vsub.f32 %v323, %v327
        %v329 = vmul.f32 %v328, %v328
        %330 = vadd.xlane.f32.xlu0 %v329
        %v331 = vpop.xlane.xlu0 %330
        %v332 = vmul.f32 %v331, %v326
        %v333 = vadd.f32 %v332, 1e-05
        %v334 = vrsqrt.pop %v333
        %v335 = vmul.f32 %v328, %v334
        %v336 = vld [vmem:[%s1] sm:$0x1]
        %v338 = vlaneseq
        %v339 = vshrl.u32 %v338, 7
        %v340 = vsub.s32 0, %v339
        %v341 = vrot.slane %v336, %v340
        %v343 = vmul.f32 %v335, %v341
        %v344 = vld [vmem:[%s2] sm:$0x1]
        %v346 = vlaneseq
        %v347 = vshrl.u32 %v346, 7
        %v348 = vsub.s32 0, %v347
        %v349 = vrot.slane %v344, %v348
        %v351 = vadd.f32 %v343, %v349
        %v352 = vld [vmem:[#allocation5] sm:$0xff]
        %v353 = vld [vmem:[#allocation5 + $0x8] sm:$0xff]
        %v354 = vld [vmem:[#allocation5 + $0x10] sm:$0xff]
        %v355 = vld [vmem:[#allocation5 + $0x18] sm:$0xff]
        %v356 = vld [vmem:[#allocation5 + $0x20] sm:$0xff]
        %v357 = vld [vmem:[#allocation5 + $0x28] sm:$0xff]
        %v358 = vld [vmem:[#allocation5 + $0x30] sm:$0xff]
        %v359 = vld [vmem:[#allocation5 + $0x38] sm:$0xff]
        %v360 = vld [vmem:[#allocation5 + $0x40] sm:$0xff]
        %v361 = vld [vmem:[#allocation5 + $0x48] sm:$0xff]
        %v362 = vld [vmem:[#allocation5 + $0x50] sm:$0xff]
        %v363 = vld [vmem:[#allocation5 + $0x58] sm:$0xff]
        %v364 = vld [vmem:[#allocation5 + $0x60] sm:$0xff]
        %v365 = vld [vmem:[#allocation5 + $0x68] sm:$0xff]
        %v366 = vld [vmem:[#allocation5 + $0x70] sm:$0xff]
        %v367 = vld [vmem:[#allocation5 + $0x78] sm:$0xff]
        %v368 = vld [vmem:[#allocation5 + $0x80] sm:$0xff]
        %v369 = vld [vmem:[#allocation5 + $0x88] sm:$0xff]
        %v370 = vld [vmem:[#allocation5 + $0x90] sm:$0xff]
        %v371 = vld [vmem:[#allocation5 + $0x98] sm:$0xff]
        %v372 = vld [vmem:[#allocation5 + $0xa0] sm:$0xff]
        %v373 = vld [vmem:[#allocation5 + $0xa8] sm:$0xff]
        %v374 = vld [vmem:[#allocation5 + $0xb0] sm:$0xff]
        %v375 = vld [vmem:[#allocation5 + $0xb8] sm:$0xff]
        %v376 = vld [vmem:[#allocation5 + $0xc0] sm:$0xff]
        %v377 = vld [vmem:[#allocation5 + $0xc8] sm:$0xff]
        %v378 = vld [vmem:[#allocation5 + $0xd0] sm:$0xff]
        %v379 = vld [vmem:[#allocation5 + $0xd8] sm:$0xff]
        %v380 = vld [vmem:[#allocation5 + $0xe0] sm:$0xff]
        %v381 = vld [vmem:[#allocation5 + $0xe8] sm:$0xff]
        %v382 = vld [vmem:[#allocation5 + $0xf0] sm:$0xff]
        %v383 = vld [vmem:[#allocation5 + $0xf8] sm:$0xff]
        %v384 = vld [vmem:[%s4] sm:$0x3]
        %v386 = vlaneseq
        %v387 = vshrl.u32 %v386, 7
        %v388 = vsub.s32 0, %v387
        %v389 = vrot.slane %v384, %v388
        %v390 = vlaneseq
        %v391 = vshrl.u32 %v390, 7
        %v392 = vsub.s32 1, %v391
        %v393 = vrot.slane %v384, %v392
        %396 = vmatprep.subr.mxu0 %v353
        %397 = vmatpush1.msra.mxu0 %v352
        %398 = vmatprep.subr.mxu0 %v355
        %399 = vmatpush1.msra.mxu0 %v354
        %400 = vmatprep.subr.mxu0 %v357
        %401 = vmatpush1.msra.mxu0 %v356
        %402 = vmatprep.subr.mxu0 %v359
        %403 = vmatpush1.msra.mxu0 %v358
        %404 = vmatprep.subr.mxu0 %v361
        %405 = vmatpush1.msra.mxu0 %v360
        %406 = vmatprep.subr.mxu0 %v363
        %407 = vmatpush1.msra.mxu0 %v362
        %408 = vmatprep.subr.mxu0 %v365
        %409 = vmatpush1.msra.mxu0 %v364
        %410 = vmatprep.subr.mxu0 %v367
        %411 = vmatpush1.msra.mxu0 %v366
        %412 = vmatprep.subr.mxu0 %v369
        %413 = vmatpush1.msra.mxu0 %v368
        %414 = vmatprep.subr.mxu0 %v371
        %415 = vmatpush1.msra.mxu0 %v370
        %416 = vmatprep.subr.mxu0 %v373
        %417 = vmatpush1.msra.mxu0 %v372
        %418 = vmatprep.subr.mxu0 %v375
        %419 = vmatpush1.msra.mxu0 %v374
        %420 = vmatprep.subr.mxu0 %v377
        %421 = vmatpush1.msra.mxu0 %v376
        %422 = vmatprep.subr.mxu0 %v379
        %423 = vmatpush1.msra.mxu0 %v378
        %424 = vmatprep.subr.mxu0 %v381
        %425 = vmatpush1.msra.mxu0 %v380
        %426 = vmatprep.subr.mxu0 %v383
        %427 = vmatpush1.msra.mxu0 %v382
        %428 = vmatprep.subr.mxu0 0.0
        %429 = vmatpush1.msra.mxu0 0.0
        %430 = vmatprep.subr.mxu0 0.0
        %431 = vmatpush1.msra.mxu0 0.0
        %432 = vmatprep.subr.mxu0 0.0
        %433 = vmatpush1.msra.mxu0 0.0
        %434 = vmatprep.subr.mxu0 0.0
        %435 = vmatpush1.msra.mxu0 0.0
        %436 = vmatprep.subr.mxu0 0.0
        %437 = vmatpush1.msra.mxu0 0.0
        %438 = vmatprep.subr.mxu0 0.0
        %439 = vmatpush1.msra.mxu0 0.0
        %440 = vmatprep.subr.mxu0 0.0
        %441 = vmatpush1.msra.mxu0 0.0
        %442 = vmatprep.subr.mxu0 0.0
        %443 = vmatpush1.msra.mxu0 0.0
        %444 = vmatprep.subr.mxu0 0.0
        %445 = vmatpush1.msra.mxu0 0.0
        %446 = vmatprep.subr.mxu0 0.0
        %447 = vmatpush1.msra.mxu0 0.0
        %448 = vmatprep.subr.mxu0 0.0
        %449 = vmatpush1.msra.mxu0 0.0
        %450 = vmatprep.subr.mxu0 0.0
        %451 = vmatpush1.msra.mxu0 0.0
        %452 = vmatprep.subr.mxu0 0.0
        %453 = vmatpush1.msra.mxu0 0.0
        %454 = vmatprep.subr.mxu0 0.0
        %455 = vmatpush1.msra.mxu0 0.0
        %456 = vmatprep.subr.mxu0 0.0
        %457 = vmatpush1.msra.mxu0 0.0
        %458 = vmatprep.subr.mxu0 0.0
        %459 = vmatpush1.msra.mxu0 0.0
        %460 = vmatprep.mubr.f32.mxu0 0.0
        %461 = vmatmul.mubr.f32.gmra.mrb[0].mxu0 %v351
        %v462 = vpop.f32.mrb[0].mxu0
        %v463 = vadd.f32 %v389, %v462
        %v464 = vpop.f32.mrb[0].mxu0
        %v465 = vadd.f32 %v393, %v464
        %466 = vdwg.mxu0
        %v467 = vmul.f32 %v463, 0.5
        %v468 = vmul.f32 %v465, 0.5
        %v469 = vmul.f32 %v463, 0.70710677
        %v470 = vmul.f32 %v465, 0.70710677
        %v471 = verf.f32.pop %v469
        %v472 = verf.f32.pop %v470
        %v473 = vadd.f32 %v471, 1.0
        %v474 = vadd.f32 %v472, 1.0
        %v475 = vmul.f32 %v467, %v473
        %v476 = vmul.f32 %v468, %v474
        %v477 = vld [vmem:[#allocation7] sm:$0xff]
        %v478 = vld [vmem:[#allocation7 + $0x8] sm:$0xff]
        %v479 = vld [vmem:[#allocation7 + $0x10] sm:$0xff]
        %v480 = vld [vmem:[#allocation7 + $0x18] sm:$0xff]
        %v481 = vld [vmem:[#allocation7 + $0x20] sm:$0xff]
        %v482 = vld [vmem:[#allocation7 + $0x28] sm:$0xff]
        %v483 = vld [vmem:[#allocation7 + $0x30] sm:$0xff]
        %v484 = vld [vmem:[#allocation7 + $0x38] sm:$0xff]
        %v485 = vld [vmem:[#allocation7 + $0x40] sm:$0xff]
        %v486 = vld [vmem:[#allocation7 + $0x48] sm:$0xff]
        %v487 = vld [vmem:[#allocation7 + $0x50] sm:$0xff]
        %v488 = vld [vmem:[#allocation7 + $0x58] sm:$0xff]
        %v489 = vld [vmem:[#allocation7 + $0x60] sm:$0xff]
        %v490 = vld [vmem:[#allocation7 + $0x68] sm:$0xff]
        %v491 = vld [vmem:[#allocation7 + $0x70] sm:$0xff]
        %v492 = vld [vmem:[#allocation7 + $0x78] sm:$0xff]
        %v493 = vld [vmem:[#allocation7 + $0x80] sm:$0xff]
        %v494 = vld [vmem:[#allocation7 + $0x88] sm:$0xff]
        %v495 = vld [vmem:[#allocation7 + $0x90] sm:$0xff]
        %v496 = vld [vmem:[#allocation7 + $0x98] sm:$0xff]
        %v497 = vld [vmem:[#allocation7 + $0xa0] sm:$0xff]
        %v498 = vld [vmem:[#allocation7 + $0xa8] sm:$0xff]
        %v499 = vld [vmem:[#allocation7 + $0xb0] sm:$0xff]
        %v500 = vld [vmem:[#allocation7 + $0xb8] sm:$0xff]
        %v501 = vld [vmem:[#allocation7 + $0xc0] sm:$0xff]
        %v502 = vld [vmem:[#allocation7 + $0xc8] sm:$0xff]
        %v503 = vld [vmem:[#allocation7 + $0xd0] sm:$0xff]
        %v504 = vld [vmem:[#allocation7 + $0xd8] sm:$0xff]
        %v505 = vld [vmem:[#allocation7 + $0xe0] sm:$0xff]
        %v506 = vld [vmem:[#allocation7 + $0xe8] sm:$0xff]
        %v507 = vld [vmem:[#allocation7 + $0xf0] sm:$0xff]
        %v508 = vld [vmem:[#allocation7 + $0xf8] sm:$0xff]
        %v509 = vld [vmem:[%s6] sm:$0x1]
        %v511 = vlaneseq
        %v512 = vshrl.u32 %v511, 7
        %v513 = vsub.s32 0, %v512
        %v514 = vrot.slane %v509, %v513
        %516 = vmatprep.subr.mxu0 0.0
        %517 = vmatpush1.msra.mxu0 %v477
        %518 = vmatprep.subr.mxu0 0.0
        %519 = vmatpush1.msra.mxu0 %v478
        %520 = vmatprep.subr.mxu0 0.0
        %521 = vmatpush1.msra.mxu0 %v479
        %522 = vmatprep.subr.mxu0 0.0
        %523 = vmatpush1.msra.mxu0 %v480
        %524 = vmatprep.subr.mxu0 0.0
        %525 = vmatpush1.msra.mxu0 %v481
        %526 = vmatprep.subr.mxu0 0.0
        %527 = vmatpush1.msra.mxu0 %v482
        %528 = vmatprep.subr.mxu0 0.0
        %529 = vmatpush1.msra.mxu0 %v483
        %530 = vmatprep.subr.mxu0 0.0
        %531 = vmatpush1.msra.mxu0 %v484
        %532 = vmatprep.subr.mxu0 0.0
        %533 = vmatpush1.msra.mxu0 %v485
        %534 = vmatprep.subr.mxu0 0.0
        %535 = vmatpush1.msra.mxu0 %v486
        %536 = vmatprep.subr.mxu0 0.0
        %537 = vmatpush1.msra.mxu0 %v487
        %538 = vmatprep.subr.mxu0 0.0
        %539 = vmatpush1.msra.mxu0 %v488
        %540 = vmatprep.subr.mxu0 0.0
        %541 = vmatpush1.msra.mxu0 %v489
        %542 = vmatprep.subr.mxu0 0.0
        %543 = vmatpush1.msra.mxu0 %v490
        %544 = vmatprep.subr.mxu0 0.0
        %545 = vmatpush1.msra.mxu0 %v491
        %546 = vmatprep.subr.mxu0 0.0
        %547 = vmatpush1.msra.mxu0 %v492
        %548 = vmatprep.subr.mxu0 0.0
        %549 = vmatpush1.msra.mxu0 %v493
        %550 = vmatprep.subr.mxu0 0.0
        %551 = vmatpush1.msra.mxu0 %v494
        %552 = vmatprep.subr.mxu0 0.0
        %553 = vmatpush1.msra.mxu0 %v495
        %554 = vmatprep.subr.mxu0 0.0
        %555 = vmatpush1.msra.mxu0 %v496
        %556 = vmatprep.subr.mxu0 0.0
        %557 = vmatpush1.msra.mxu0 %v497
        %558 = vmatprep.subr.mxu0 0.0
        %559 = vmatpush1.msra.mxu0 %v498
        %560 = vmatprep.subr.mxu0 0.0
        %561 = vmatpush1.msra.mxu0 %v499
        %562 = vmatprep.subr.mxu0 0.0
        %563 = vmatpush1.msra.mxu0 %v500
        %564 = vmatprep.subr.mxu0 0.0
        %565 = vmatpush1.msra.mxu0 %v501
        %566 = vmatprep.subr.mxu0 0.0
        %567 = vmatpush1.msra.mxu0 %v502
        %568 = vmatprep.subr.mxu0 0.0
        %569 = vmatpush1.msra.mxu0 %v503
        %570 = vmatprep.subr.mxu0 0.0
        %571 = vmatpush1.msra.mxu0 %v504
        %572 = vmatprep.subr.mxu0 0.0
        %573 = vmatpush1.msra.mxu0 %v505
        %574 = vmatprep.subr.mxu0 0.0
        %575 = vmatpush1.msra.mxu0 %v506
        %576 = vmatprep.subr.mxu0 0.0
        %577 = vmatpush1.msra.mxu0 %v507
        %578 = vmatprep.subr.mxu0 0.0
        %579 = vmatpush1.msra.mxu0 %v508
        %580 = vmatprep.mubr.f32.mxu0 %v476
        %581 = vmatmul.mubr.f32.gmra.mrb[0].mxu0 %v475
        %v582 = vpop.f32.mrb[0].mxu0
        %v583 = vadd.f32 %v514, %v582
        %v584 = vpop.f32.mrb[0].mxu0
        %585 = vdwg.mxu0
        %586 = vst [vmem:[%s322] sm:$0xff] %v583
        %s587 = sand.u32 %s185, 1
        %s588 = scalar_lea.sflag [#allocation4], %s587
        %s589 = sand.u32 %s185, 1
        %s590 = smul.addr %s589, 8
        %s591 = scalar_lea.vmem [#allocation8], %s590
        // Predicated region
        $region61: #{tpu_custom_call.1} parent=47 // pred_check
          %p592 = pneg %p195
        $region62: #{tpu_custom_call.1} parent=47 // pred_check_branch
          %594 = sbr.rel (%p592) target = $region64
        $region63: #{tpu_custom_call.1} parent=47 // pred_region
          %s596 = ssub.s32 128, 128
          %597 = vsyncadd %s588, %s596
          %s598 = smul.addr %s25, 128
          %s599 = scalar_lea.hbm %s7, %s598
          %s601 = sshll.u32 %s591, 4
          %s602 = int_to_ptr.vmem [resolvable:$true] %s601
          %604 = dma.vmem_to_hbm [thread:$0]  %s602, 128, %s599, %s588
        $region64: #{tpu_custom_call.1} parent=47 // pred_fallthru
          _
      $region48: #{tpu_custom_call.1} parent=5 // pred_fallthru
        _
      %p605 = scmp.le.s32.totalorder 2, %s20
      // Predicated region
      $region65: #{tpu_custom_call.1} parent=5 // pred_check
        %p606 = pneg %p605
      $region66: #{tpu_custom_call.1} parent=5 // pred_check_branch
        %608 = sbr.rel (%p606) target = $region68
      $region67: #{tpu_custom_call.1} parent=5 // pred_region
        %s609 = ssub.s32 %s20, 2
        // Predicated region
        $region69: #{tpu_custom_call.1} parent=67 // pred_check
          %p610 = pneg %p201
        $region70: #{tpu_custom_call.1} parent=67 // pred_check_branch
          %612 = sbr.rel (%p610) target = $region72
        $region71: #{tpu_custom_call.1} parent=67 // pred_region
          %s613 = sand.u32 %s186, 1
          %s614 = scalar_lea.sflag [#allocation4], %s613
          %s615 = sand.u32 %s186, 1
          %s616 = smul.addr %s615, 8
          %s617 = scalar_lea.vmem [#allocation8], %s616
          %618 = dma.done %s614, 128
        $region72: #{tpu_custom_call.1} parent=67 // pred_fallthru
          _
      $region68: #{tpu_custom_call.1} parent=5 // pred_fallthru
        _
    $region6: #{tpu_custom_call.1} parent=1 // loop_footer
      %s24 = sadd.s32 1, %s20
    $region7: #{tpu_custom_call.1} parent=1 // loop_footer_branch
      %19 = sbr.rel target = $region3
    $region8: #{tpu_custom_call.1} parent=1 // loop_exit
      _
    %619 = vsyncpa [#allocation3], 1
    %s620 = scalar_lea.sflag [#allocation3], 1
    %621 = vsyncpa %s620, 1
    %622 = vsyncpa [#allocation6], 1
    %623 = vsyncpa [#allocation4], 1
    %s624 = scalar_lea.sflag [#allocation4], 1
    %625 = vsyncpa %s624, 1

</llo_original>
